<compile_context>
chip_gen: v5e
topology: v5e:2x2
jax: 0.10.0
libtpu: 0.0.40
codegen_flags: <defaults>
</compile_context>

<pallas_src>
import functools

import jax
import jax.numpy as jnp
from jax.experimental import pallas as pl
from jax.experimental.pallas import tpu as pltpu


def _fused_cnn_kernel(xt_ref, w1_ref, w2_ref, w3_ref, w4_ref, bn_ref,
                      out_ref, h1_ref, rhs_ref, *, block_b, s1p, wo1, cols2):
    c1 = w1_ref.shape[0]
    n_taps = w1_ref.shape[1]
    c2 = w2_ref.shape[0]
    c3 = w3_ref.shape[0]
    c4 = w4_ref.shape[0]

    # Unpack the folded-BN (mult, add) column vectors from the single packed input.
    # All offsets/sizes are multiples of 8 -> clean sublane slices.
    offs, o = {}, 0
    for name, c in (("m1", c1), ("a1", c1), ("m2", c2), ("a2", c2),
                    ("m3", c3), ("a3", c3), ("m4", c4), ("a4", c4)):
        offs[name] = (o, o + c)
        o += c

    def bn(name):
        lo, hi = offs[name]
        return bn_ref[lo:hi, :]                      # (C, 1) f32, lane-broadcast later

    # ----- Layer 1: 2x2 conv, K = Cin*4 is tiny -> VPU shift-and-add outer products.
    #       Output is channel-major (C1, B*S1P), all B samples at once.
    xt = xt_ref[0]                                   # (n_taps, B*S1P) f32
    w1 = w1_ref[...]                                 # (C1, n_taps) f32
    acc1 = w1[:, 0:1] * xt[0:1, :]
    for t in range(1, n_taps):
        acc1 = acc1 + w1[:, t:t + 1] * xt[t:t + 1, :]
    # fused bias+BN+ReLU, then a SINGLE f32->bf16 pack into the VMEM activation scratch
    h1_ref[...] = jnp.maximum(acc1 * bn("m1") + bn("a1"), 0.0).astype(jnp.bfloat16)

    # ----- Layer 2: build the stacked K=4*C1 RHS ONCE (in-kernel im2col over the
    #       bf16 layer-1 scratch), then a single K=256 MXU matmul for all B samples.
    for t in range(4):
        off = (t // 2) * wo1 + (t % 2)
        for b in range(block_b):
            rhs_ref[t * c1:(t + 1) * c1, b * cols2:(b + 1) * cols2] = (
                h1_ref[:, b * s1p + off: b * s1p + off + cols2])

    acc2 = jnp.dot(w2_ref[...], rhs_ref[...], preferred_element_type=jnp.float32)
    h2 = jnp.maximum(acc2 * bn("m2") + bn("a2"), 0.0).astype(jnp.bfloat16)

    # ----- Layers 3 & 4: 1x1 convs are plain channel matmuls (lane-dense RHS).
    acc3 = jnp.dot(w3_ref[...], h2, preferred_element_type=jnp.float32)
    h3 = jnp.maximum(acc3 * bn("m3") + bn("a3"), 0.0).astype(jnp.bfloat16)
    acc4 = jnp.dot(w4_ref[...], h3, preferred_element_type=jnp.float32)
    out_ref[0] = jnp.maximum(acc4 * bn("m4") + bn("a4"), 0.0)   # (C4, B*cols2) f32


def _fold_bn(p, eps=1e-5):
    """Fold conv bias + eval-mode BatchNorm into per-channel (mult, add), shaped (C,1)."""
    scale = p["gamma"] / jnp.sqrt(p["var"] + eps)
    mult = scale
    add = (p["b"] - p["mean"]) * scale + p["beta"]
    return mult[:, None].astype(jnp.float32), add[:, None].astype(jnp.float32)


def _pick_block_b(n, max_b=8):
    """Largest divisor of n that is <= max_b while keeping >= 2 grid steps (v7x 2-TC)."""
    best = 1
    for b in range(1, min(max_b, n) + 1):
        if n % b == 0 and (n // b >= 2 or n < 2):
            best = b
    return best


@functools.partial(jax.jit, static_argnames=("block_b",))
def _forward_impl(x_nchw, params, block_b):
    N, Cin, H, W = x_nchw.shape
    assert N % block_b == 0
    p1, p2, p3, p4 = params
    C1, C2, C3, C4 = (p["w"].shape[0] for p in params)
    Ho1, Wo1 = H - 1, W - 1
    Ho2, Wo2 = H - 2, W - 2
    S1 = Ho1 * Wo1
    S1P = S1 + 1            # one zero pad column per sample (feeds only dropped outputs)
    COLS2 = Ho2 * Wo1       # conv2 columns incl. one garbage column per row (dropped)
    T = Cin * 4
    B = block_b
    Nb = N // B

    # Layer-1 im2col of the raw input (tiny at these shapes), padded to S1P columns per
    # sample, then block-packed so each grid step sees B samples concatenated along lanes.
    taps = []
    for ci in range(Cin):
        for di in range(2):
            for dj in range(2):
                taps.append(x_nchw[:, ci, di:di + Ho1, dj:dj + Wo1].reshape(N, S1))
    x_taps = jnp.stack(taps, axis=1).astype(jnp.float32)            # (N, T, S1)
    x_taps = jnp.pad(x_taps, ((0, 0), (0, 0), (0, 1)))              # (N, T, S1P)
    x_blk = (x_taps.reshape(Nb, B, T, S1P)
             .transpose(0, 2, 1, 3)
             .reshape(Nb, T, B * S1P))                              # (Nb, T, B*S1P)

    mult1, add1 = _fold_bn(p1)
    mult2, add2 = _fold_bn(p2)
    mult3, add3 = _fold_bn(p3)
    mult4, add4 = _fold_bn(p4)
    bn_packed = jnp.concatenate(
        [mult1, add1, mult2, add2, mult3, add3, mult4, add4], axis=0)   # (352, 1) f32

    w1m = p1["w"].reshape(C1, T).astype(jnp.float32)                # VPU path stays f32
    # Stacked layer-2 weight, columns ordered (di, dj, cin) to match the stacked RHS.
    w2s = jnp.transpose(p2["w"], (0, 2, 3, 1)).reshape(C2, 4 * C1).astype(jnp.bfloat16)
    w3m = p3["w"][:, :, 0, 0].astype(jnp.bfloat16)                  # (C3, C2)
    w4m = p4["w"][:, :, 0, 0].astype(jnp.bfloat16)                  # (C4, C3)

    kernel = functools.partial(_fused_cnn_kernel,
                               block_b=B, s1p=S1P, wo1=Wo1, cols2=COLS2)

    in_specs = [
        pl.BlockSpec((1, T, B * S1P), lambda n: (n, 0, 0)),    # per-step input taps
        pl.BlockSpec((C1, T), lambda n: (0, 0)),               # w1  (f32, VPU)
        pl.BlockSpec((C2, 4 * C1), lambda n: (0, 0)),          # w2 stacked (bf16, K=256)
        pl.BlockSpec((C3, C2), lambda n: (0, 0)),              # w3  (bf16)
        pl.BlockSpec((C4, C3), lambda n: (0, 0)),              # w4  (bf16)
        pl.BlockSpec((2 * (C1 + C2 + C3 + C4), 1), lambda n: (0, 0)),  # packed BN
    ]

    out_blk = pl.pallas_call(
        kernel,
        out_shape=jax.ShapeDtypeStruct((Nb, C4, B * COLS2), jnp.float32),
        grid_spec=pltpu.PrefetchScalarGridSpec(
            num_scalar_prefetch=0,
            grid=(Nb,),
            in_specs=in_specs,
            out_specs=pl.BlockSpec((1, C4, B * COLS2), lambda n: (n, 0, 0)),
            scratch_shapes=[
                pltpu.VMEM((C1, B * S1P), jnp.bfloat16),        # layer-1 activation (bf16)
                pltpu.VMEM((4 * C1, B * COLS2), jnp.bfloat16),  # stacked K=256 layer-2 RHS
            ],
        ),
        compiler_params=pltpu.CompilerParams(
            dimension_semantics=("parallel",),   # v7x: shard grid steps over both TCs
        ),
    )(x_blk, w1m, w2s, w3m, w4m, bn_packed)

    # Un-block samples, drop the per-row garbage column (j == Wo1-1), and flatten:
    # exactly x.view(N, 16, -1).
    out = (out_blk.reshape(Nb, C4, B, COLS2)
           .transpose(0, 2, 1, 3)
           .reshape(N, C4, Ho2, Wo1)[:, :, :, :Wo2]
           .reshape(N, C4, Ho2 * Wo2))
    return out


def cnn_layers_1_forward(x_nchw, params, block_b=None):
    """Forward pass of cnn_layers_1. Input x: (N, Cin, H, W) float32 (NCHW)."""
    if block_b is None:
        block_b = _pick_block_b(x_nchw.shape[0])
    return _forward_impl(x_nchw, params, block_b=block_b)


def init_params(key, input_size):
    """Deterministic parameter init matching cnn_layers_1(input_size)."""
    specs = [
        (64, input_size, 2, 2),
        (64, 64, 2, 2),
        (32, 64, 1, 1),
        (16, 32, 1, 1),
    ]
    params = []
    for spec in specs:
        key, kw_, kb_, kg_, kbt_ = jax.random.split(key, 5)
        cout = spec[0]
        params.append(
            dict(
                w=0.1 * jax.random.normal(kw_, spec, dtype=jnp.float32),
                b=0.1 * jax.random.normal(kb_, (cout,), dtype=jnp.float32),
                gamma=1.0 + 0.1 * jax.random.normal(kg_, (cout,), dtype=jnp.float32),
                beta=0.1 * jax.random.normal(kbt_, (cout,), dtype=jnp.float32),
                mean=jnp.zeros((cout,), jnp.float32),
                var=jnp.ones((cout,), jnp.float32),
            )
        )
    return params


def _reference_forward(x, params, eps=1e-5):
    """Pure-JAX (XLA, f32) reference with identical forward semantics, for validation."""
    for p in params:
        y = jax.lax.conv_general_dilated(
            x, p["w"], window_strides=(1, 1), padding="VALID",
            dimension_numbers=("NCHW", "OIHW", "NCHW"))
        y = y + p["b"][None, :, None, None]
        scale = (p["gamma"] / jnp.sqrt(p["var"] + eps))[None, :, None, None]
        y = (y - p["mean"][None, :, None, None]) * scale + p["beta"][None, :, None, None]
        x = jnp.maximum(y, 0.0)
    return x.reshape(x.shape[0], 16, -1)


if __name__ == "__main__":
    key = jax.random.PRNGKey(0)
    k_param, k_data = jax.random.split(key)

    input_size = 1
    params = init_params(k_param, input_size)

    # small deterministic input: batch=4, channels=1, 16x16 spatial (NCHW)
    # -> block_b=2 samples per grid step, grid=(2,) (even: both v7x TCs busy)
    x = jax.random.normal(k_data, (4, input_size, 16, 16), dtype=jnp.float32)

    out = jax.block_until_ready(cnn_layers_1_forward(x, params))

    # (4,1,16,16) -> 2x2 -> (4,64,15,15) -> 2x2 -> (4,64,14,14) -> 1x1 -> (4,32,14,14)
    # -> 1x1 -> (4,16,14,14) -> view -> (4,16,196)
    assert out.shape == (4, 16, 196), out.shape
    assert bool(jnp.all(out >= 0.0)), "ReLU output must be non-negative"

    # loose tolerance: MXU operands are bf16 (accumulation stays f32)
    ref = _reference_forward(x, params)
    err = float(jnp.max(jnp.abs(out - ref)))
    assert err < 0.1, f"max abs error vs f32 reference too large: {err}"

    print("KERNEL_OK")
</pallas_src>

<mosaic_0001>
module attributes {stable_mosaic.version = 11 : i64} {
  func.func @_fused_cnn_kernel(%arg0: i32, %arg1: memref<1x4x452xf32, #tpu.memory_space<vmem>>, %arg2: memref<64x4xf32, #tpu.memory_space<vmem>>, %arg3: memref<64x256xbf16, #tpu.memory_space<vmem>>, %arg4: memref<32x64xbf16, #tpu.memory_space<vmem>>, %arg5: memref<16x32xbf16, #tpu.memory_space<vmem>>, %arg6: memref<352x1xf32, #tpu.memory_space<vmem>>, %arg7: memref<1x16x420xf32, #tpu.memory_space<vmem>>, %arg8: memref<64x452xbf16, #tpu.memory_space<vmem>>, %arg9: memref<256x420xbf16, #tpu.memory_space<vmem>>) attributes {dimension_semantics = [#tpu.dimension_semantics<parallel>], iteration_bounds = array<i64: 2>, scalar_prefetch = 0 : i64, scratch_operands = 2 : i64, tpu.core_type = #tpu.core_type<tc>, window_params = [{transform_indices = @transform_0, window_bounds = array<i64: 1, 4, 452>}, {pipeline_mode = #tpu.pipeline_mode<synchronous>, transform_indices = @transform_1, window_bounds = array<i64: 64, 4>}, {pipeline_mode = #tpu.pipeline_mode<synchronous>, transform_indices = @transform_2, window_bounds = array<i64: 64, 256>}, {pipeline_mode = #tpu.pipeline_mode<synchronous>, transform_indices = @transform_3, window_bounds = array<i64: 32, 64>}, {pipeline_mode = #tpu.pipeline_mode<synchronous>, transform_indices = @transform_4, window_bounds = array<i64: 16, 32>}, {pipeline_mode = #tpu.pipeline_mode<synchronous>, transform_indices = @transform_5, window_bounds = array<i64: 352, 1>}, {transform_indices = @transform_6, window_bounds = array<i64: 1, 16, 420>}]} {
    %c0 = arith.constant 0 : index
    %c0_0 = arith.constant 0 : index
    %c0_1 = arith.constant 0 : index
    %0 = vector.load %arg1[%c0, %c0_0, %c0_1] : memref<1x4x452xf32, #tpu.memory_space<vmem>>, vector<1x4x452xf32>
    %1 = vector.shape_cast %0 : vector<1x4x452xf32> to vector<4x452xf32>
    %c0_2 = arith.constant 0 : index
    %c0_3 = arith.constant 0 : index
    %2 = vector.load %arg2[%c0_2, %c0_3] : memref<64x4xf32, #tpu.memory_space<vmem>>, vector<64x4xf32>
    %3 = vector.extract_strided_slice %2 {offsets = [0, 0], sizes = [64, 1], strides = [1, 1]} : vector<64x4xf32> to vector<64x1xf32>
    %4 = vector.extract_strided_slice %1 {offsets = [0, 0], sizes = [1, 452], strides = [1, 1]} : vector<4x452xf32> to vector<1x452xf32>
    %5 = vector.broadcast %3 : vector<64x1xf32> to vector<64x452xf32>
    %6 = vector.broadcast %4 : vector<1x452xf32> to vector<64x452xf32>
    %7 = arith.mulf %5, %6 : vector<64x452xf32>
    %8 = vector.extract_strided_slice %2 {offsets = [0, 1], sizes = [64, 1], strides = [1, 1]} : vector<64x4xf32> to vector<64x1xf32>
    %9 = vector.extract_strided_slice %1 {offsets = [1, 0], sizes = [1, 452], strides = [1, 1]} : vector<4x452xf32> to vector<1x452xf32>
    %10 = vector.broadcast %8 : vector<64x1xf32> to vector<64x452xf32>
    %11 = vector.broadcast %9 : vector<1x452xf32> to vector<64x452xf32>
    %12 = arith.mulf %10, %11 : vector<64x452xf32>
    %13 = arith.addf %7, %12 : vector<64x452xf32>
    %14 = vector.extract_strided_slice %2 {offsets = [0, 2], sizes = [64, 1], strides = [1, 1]} : vector<64x4xf32> to vector<64x1xf32>
    %15 = vector.extract_strided_slice %1 {offsets = [2, 0], sizes = [1, 452], strides = [1, 1]} : vector<4x452xf32> to vector<1x452xf32>
    %16 = vector.broadcast %14 : vector<64x1xf32> to vector<64x452xf32>
    %17 = vector.broadcast %15 : vector<1x452xf32> to vector<64x452xf32>
    %18 = arith.mulf %16, %17 : vector<64x452xf32>
    %19 = arith.addf %13, %18 : vector<64x452xf32>
    %20 = vector.extract_strided_slice %2 {offsets = [0, 3], sizes = [64, 1], strides = [1, 1]} : vector<64x4xf32> to vector<64x1xf32>
    %21 = vector.extract_strided_slice %1 {offsets = [3, 0], sizes = [1, 452], strides = [1, 1]} : vector<4x452xf32> to vector<1x452xf32>
    %22 = vector.broadcast %20 : vector<64x1xf32> to vector<64x452xf32>
    %23 = vector.broadcast %21 : vector<1x452xf32> to vector<64x452xf32>
    %24 = arith.mulf %22, %23 : vector<64x452xf32>
    %25 = arith.addf %19, %24 : vector<64x452xf32>
    %c0_4 = arith.constant 0 : index
    %c0_5 = arith.constant 0 : index
    %26 = vector.load %arg6[%c0_4, %c0_5] : memref<352x1xf32, #tpu.memory_space<vmem>>, vector<64x1xf32>
    %27 = vector.broadcast %26 : vector<64x1xf32> to vector<64x452xf32>
    %28 = arith.mulf %25, %27 : vector<64x452xf32>
    %c64 = arith.constant 64 : index
    %c0_6 = arith.constant 0 : index
    %29 = vector.load %arg6[%c64, %c0_6] : memref<352x1xf32, #tpu.memory_space<vmem>>, vector<64x1xf32>
    %30 = vector.broadcast %29 : vector<64x1xf32> to vector<64x452xf32>
    %31 = arith.addf %28, %30 : vector<64x452xf32>
    %cst = arith.constant 0.000000e+00 : f32
    %32 = vector.broadcast %cst : f32 to vector<64x452xf32>
    %33 = arith.maximumf %31, %32 : vector<64x452xf32>
    %34 = arith.truncf %33 : vector<64x452xf32> to vector<64x452xbf16>
    %c0_7 = arith.constant 0 : index
    %c0_8 = arith.constant 0 : index
    %35 = vector.load %arg8[%c0_7, %c0_8] : memref<64x452xbf16, #tpu.memory_space<vmem>>, vector<64x452xbf16>
    tpu.vector_store %arg8[%c0_7, %c0_8], %34 {strides = array<i32>} : memref<64x452xbf16, #tpu.memory_space<vmem>>, vector<64x452xbf16>,
    %c0_9 = arith.constant 0 : index
    %c0_10 = arith.constant 0 : index
    %36 = vector.load %arg8[%c0_9, %c0_10] : memref<64x452xbf16, #tpu.memory_space<vmem>>, vector<64x210xbf16>
    %c0_11 = arith.constant 0 : index
    %c0_12 = arith.constant 0 : index
    %37 = vector.load %arg9[%c0_11, %c0_12] : memref<256x420xbf16, #tpu.memory_space<vmem>>, vector<64x210xbf16>
    tpu.vector_store %arg9[%c0_11, %c0_12], %36 {strides = array<i32>} : memref<256x420xbf16, #tpu.memory_space<vmem>>, vector<64x210xbf16>,
    %c0_13 = arith.constant 0 : index
    %c226 = arith.constant 226 : index
    %38 = vector.load %arg8[%c0_13, %c226] : memref<64x452xbf16, #tpu.memory_space<vmem>>, vector<64x210xbf16>
    %c0_14 = arith.constant 0 : index
    %c210 = arith.constant 210 : index
    %39 = vector.load %arg9[%c0_14, %c210] : memref<256x420xbf16, #tpu.memory_space<vmem>>, vector<64x210xbf16>
    tpu.vector_store %arg9[%c0_14, %c210], %38 {strides = array<i32>} : memref<256x420xbf16, #tpu.memory_space<vmem>>, vector<64x210xbf16>,
    %c0_15 = arith.constant 0 : index
    %c1 = arith.constant 1 : index
    %40 = vector.load %arg8[%c0_15, %c1] : memref<64x452xbf16, #tpu.memory_space<vmem>>, vector<64x210xbf16>
    %c64_16 = arith.constant 64 : index
    %c0_17 = arith.constant 0 : index
    %41 = vector.load %arg9[%c64_16, %c0_17] : memref<256x420xbf16, #tpu.memory_space<vmem>>, vector<64x210xbf16>
    tpu.vector_store %arg9[%c64_16, %c0_17], %40 {strides = array<i32>} : memref<256x420xbf16, #tpu.memory_space<vmem>>, vector<64x210xbf16>,
    %c0_18 = arith.constant 0 : index
    %c227 = arith.constant 227 : index
    %42 = vector.load %arg8[%c0_18, %c227] : memref<64x452xbf16, #tpu.memory_space<vmem>>, vector<64x210xbf16>
    %c64_19 = arith.constant 64 : index
    %c210_20 = arith.constant 210 : index
    %43 = vector.load %arg9[%c64_19, %c210_20] : memref<256x420xbf16, #tpu.memory_space<vmem>>, vector<64x210xbf16>
    tpu.vector_store %arg9[%c64_19, %c210_20], %42 {strides = array<i32>} : memref<256x420xbf16, #tpu.memory_space<vmem>>, vector<64x210xbf16>,
    %c0_21 = arith.constant 0 : index
    %c15 = arith.constant 15 : index
    %44 = vector.load %arg8[%c0_21, %c15] : memref<64x452xbf16, #tpu.memory_space<vmem>>, vector<64x210xbf16>
    %c128 = arith.constant 128 : index
    %c0_22 = arith.constant 0 : index
    %45 = vector.load %arg9[%c128, %c0_22] : memref<256x420xbf16, #tpu.memory_space<vmem>>, vector<64x210xbf16>
    tpu.vector_store %arg9[%c128, %c0_22], %44 {strides = array<i32>} : memref<256x420xbf16, #tpu.memory_space<vmem>>, vector<64x210xbf16>,
    %c0_23 = arith.constant 0 : index
    %c241 = arith.constant 241 : index
    %46 = vector.load %arg8[%c0_23, %c241] : memref<64x452xbf16, #tpu.memory_space<vmem>>, vector<64x210xbf16>
    %c128_24 = arith.constant 128 : index
    %c210_25 = arith.constant 210 : index
    %47 = vector.load %arg9[%c128_24, %c210_25] : memref<256x420xbf16, #tpu.memory_space<vmem>>, vector<64x210xbf16>
    tpu.vector_store %arg9[%c128_24, %c210_25], %46 {strides = array<i32>} : memref<256x420xbf16, #tpu.memory_space<vmem>>, vector<64x210xbf16>,
    %c0_26 = arith.constant 0 : index
    %c16 = arith.constant 16 : index
    %48 = vector.load %arg8[%c0_26, %c16] : memref<64x452xbf16, #tpu.memory_space<vmem>>, vector<64x210xbf16>
    %c192 = arith.constant 192 : index
    %c0_27 = arith.constant 0 : index
    %49 = vector.load %arg9[%c192, %c0_27] : memref<256x420xbf16, #tpu.memory_space<vmem>>, vector<64x210xbf16>
    tpu.vector_store %arg9[%c192, %c0_27], %48 {strides = array<i32>} : memref<256x420xbf16, #tpu.memory_space<vmem>>, vector<64x210xbf16>,
    %c0_28 = arith.constant 0 : index
    %c242 = arith.constant 242 : index
    %50 = vector.load %arg8[%c0_28, %c242] : memref<64x452xbf16, #tpu.memory_space<vmem>>, vector<64x210xbf16>
    %c192_29 = arith.constant 192 : index
    %c210_30 = arith.constant 210 : index
    %51 = vector.load %arg9[%c192_29, %c210_30] : memref<256x420xbf16, #tpu.memory_space<vmem>>, vector<64x210xbf16>
    tpu.vector_store %arg9[%c192_29, %c210_30], %50 {strides = array<i32>} : memref<256x420xbf16, #tpu.memory_space<vmem>>, vector<64x210xbf16>,
    %c0_31 = arith.constant 0 : index
    %c0_32 = arith.constant 0 : index
    %52 = vector.load %arg3[%c0_31, %c0_32] : memref<64x256xbf16, #tpu.memory_space<vmem>>, vector<64x256xbf16>
    %c0_33 = arith.constant 0 : index
    %c0_34 = arith.constant 0 : index
    %53 = vector.load %arg9[%c0_33, %c0_34] : memref<256x420xbf16, #tpu.memory_space<vmem>>, vector<256x420xbf16>
    %cst_35 = arith.constant dense<0.000000e+00> : vector<64x420xf32>
    %54 = tpu.matmul %52, %53, %cst_35 {dimension_numbers = #tpu.dot_dimension_numbers<[1], [0], [0], [1], [0, 0, 1, 1], [], []>} : vector<64x256xbf16>, vector<256x420xbf16>, vector<64x420xf32> -> vector<64x420xf32>
    %c128_36 = arith.constant 128 : index
    %c0_37 = arith.constant 0 : index
    %55 = vector.load %arg6[%c128_36, %c0_37] : memref<352x1xf32, #tpu.memory_space<vmem>>, vector<64x1xf32>
    %56 = vector.broadcast %55 : vector<64x1xf32> to vector<64x420xf32>
    %57 = arith.mulf %54, %56 : vector<64x420xf32>
    %c192_38 = arith.constant 192 : index
    %c0_39 = arith.constant 0 : index
    %58 = vector.load %arg6[%c192_38, %c0_39] : memref<352x1xf32, #tpu.memory_space<vmem>>, vector<64x1xf32>
    %59 = vector.broadcast %58 : vector<64x1xf32> to vector<64x420xf32>
    %60 = arith.addf %57, %59 : vector<64x420xf32>
    %cst_40 = arith.constant 0.000000e+00 : f32
    %61 = vector.broadcast %cst_40 : f32 to vector<64x420xf32>
    %62 = arith.maximumf %60, %61 : vector<64x420xf32>
    %63 = arith.truncf %62 : vector<64x420xf32> to vector<64x420xbf16>
    %c0_41 = arith.constant 0 : index
    %c0_42 = arith.constant 0 : index
    %64 = vector.load %arg4[%c0_41, %c0_42] : memref<32x64xbf16, #tpu.memory_space<vmem>>, vector<32x64xbf16>
    %cst_43 = arith.constant dense<0.000000e+00> : vector<32x420xf32>
    %65 = tpu.matmul %64, %63, %cst_43 {dimension_numbers = #tpu.dot_dimension_numbers<[1], [0], [0], [1], [0, 0, 1, 1], [], []>} : vector<32x64xbf16>, vector<64x420xbf16>, vector<32x420xf32> -> vector<32x420xf32>
    %c256 = arith.constant 256 : index
    %c0_44 = arith.constant 0 : index
    %66 = vector.load %arg6[%c256, %c0_44] : memref<352x1xf32, #tpu.memory_space<vmem>>, vector<32x1xf32>
    %67 = vector.broadcast %66 : vector<32x1xf32> to vector<32x420xf32>
    %68 = arith.mulf %65, %67 : vector<32x420xf32>
    %c288 = arith.constant 288 : index
    %c0_45 = arith.constant 0 : index
    %69 = vector.load %arg6[%c288, %c0_45] : memref<352x1xf32, #tpu.memory_space<vmem>>, vector<32x1xf32>
    %70 = vector.broadcast %69 : vector<32x1xf32> to vector<32x420xf32>
    %71 = arith.addf %68, %70 : vector<32x420xf32>
    %cst_46 = arith.constant 0.000000e+00 : f32
    %72 = vector.broadcast %cst_46 : f32 to vector<32x420xf32>
    %73 = arith.maximumf %71, %72 : vector<32x420xf32>
    %74 = arith.truncf %73 : vector<32x420xf32> to vector<32x420xbf16>
    %c0_47 = arith.constant 0 : index
    %c0_48 = arith.constant 0 : index
    %75 = vector.load %arg5[%c0_47, %c0_48] : memref<16x32xbf16, #tpu.memory_space<vmem>>, vector<16x32xbf16>
    %cst_49 = arith.constant dense<0.000000e+00> : vector<16x420xf32>
    %76 = tpu.matmul %75, %74, %cst_49 {dimension_numbers = #tpu.dot_dimension_numbers<[1], [0], [0], [1], [0, 0, 1, 1], [], []>} : vector<16x32xbf16>, vector<32x420xbf16>, vector<16x420xf32> -> vector<16x420xf32>
    %c320 = arith.constant 320 : index
    %c0_50 = arith.constant 0 : index
    %77 = vector.load %arg6[%c320, %c0_50] : memref<352x1xf32, #tpu.memory_space<vmem>>, vector<16x1xf32>
    %78 = vector.broadcast %77 : vector<16x1xf32> to vector<16x420xf32>
    %79 = arith.mulf %76, %78 : vector<16x420xf32>
    %c336 = arith.constant 336 : index
    %c0_51 = arith.constant 0 : index
    %80 = vector.load %arg6[%c336, %c0_51] : memref<352x1xf32, #tpu.memory_space<vmem>>, vector<16x1xf32>
    %81 = vector.broadcast %80 : vector<16x1xf32> to vector<16x420xf32>
    %82 = arith.addf %79, %81 : vector<16x420xf32>
    %cst_52 = arith.constant 0.000000e+00 : f32
    %83 = vector.broadcast %cst_52 : f32 to vector<16x420xf32>
    %84 = arith.maximumf %82, %83 : vector<16x420xf32>
    %c0_53 = arith.constant 0 : index
    %c0_54 = arith.constant 0 : index
    %c0_55 = arith.constant 0 : index
    %85 = vector.load %arg7[%c0_53, %c0_54, %c0_55] : memref<1x16x420xf32, #tpu.memory_space<vmem>>, vector<1x16x420xf32>
    %86 = vector.shape_cast %85 : vector<1x16x420xf32> to vector<16x420xf32>
    %87 = vector.shape_cast %84 : vector<16x420xf32> to vector<1x16x420xf32>
    tpu.vector_store %arg7[%c0_53, %c0_54, %c0_55], %87 {strides = array<i32>} : memref<1x16x420xf32, #tpu.memory_space<vmem>>, vector<1x16x420xf32>,
    return
  }
  func.func @transform_0(%arg0: i32) -> (i32, i32, i32) {
    %c0_i32 = arith.constant 0 : i32
    %c0_i32_0 = arith.constant 0 : i32
    %c0_i32_1 = arith.constant 0 : i32
    return %arg0, %c0_i32, %c0_i32_0 : i32, i32, i32
  }
  func.func @transform_1(%arg0: i32) -> (i32, i32) {
    %c0_i32 = arith.constant 0 : i32
    %c0_i32_0 = arith.constant 0 : i32
    %c0_i32_1 = arith.constant 0 : i32
    return %c0_i32, %c0_i32_0 : i32, i32
  }
  func.func @transform_2(%arg0: i32) -> (i32, i32) {
    %c0_i32 = arith.constant 0 : i32
    %c0_i32_0 = arith.constant 0 : i32
    %c0_i32_1 = arith.constant 0 : i32
    return %c0_i32, %c0_i32_0 : i32, i32
  }
  func.func @transform_3(%arg0: i32) -> (i32, i32) {
    %c0_i32 = arith.constant 0 : i32
    %c0_i32_0 = arith.constant 0 : i32
    %c0_i32_1 = arith.constant 0 : i32
    return %c0_i32, %c0_i32_0 : i32, i32
  }
  func.func @transform_4(%arg0: i32) -> (i32, i32) {
    %c0_i32 = arith.constant 0 : i32
    %c0_i32_0 = arith.constant 0 : i32
    %c0_i32_1 = arith.constant 0 : i32
    return %c0_i32, %c0_i32_0 : i32, i32
  }
  func.func @transform_5(%arg0: i32) -> (i32, i32) {
    %c0_i32 = arith.constant 0 : i32
    %c0_i32_0 = arith.constant 0 : i32
    %c0_i32_1 = arith.constant 0 : i32
    return %c0_i32, %c0_i32_0 : i32, i32
  }
  func.func @transform_6(%arg0: i32) -> (i32, i32, i32) {
    %c0_i32 = arith.constant 0 : i32
    %c0_i32_0 = arith.constant 0 : i32
    %c0_i32_1 = arith.constant 0 : i32
    return %arg0, %c0_i32, %c0_i32_0 : i32, i32, i32
  }
}

</mosaic_0001>

<llo_original>
// kernel: squeeze.0
$region0: #{squeeze.0}
  %s0 = inlined_call_operand.vmem [shape: f32[4,1,15,15], index: 0, kind: input, shape index: {}]
  %s1 = inlined_call_operand.vmem [shape: f32[4,1,225], index: 1, kind: output, shape index: {}]
  $region1: #{squeeze.0} parent=0
    #allocation0 [shape = 'u8[32768]{0}', space=vmem, size = 0x8000, scoped, tag = 'scoped mem for output reshape']
    %s2 = smov 3
    %v3 = vld [vmem:[%s0] ss:$16 sm:%s2]
    %s4 = smov 12
    %v5 = vld [vmem:[%s0] ss:$16 sm:%s4]
    %vm6 = vcmask 1043458
    %v7 = vsel %vm6, %v5, %v3
    %vm8 = vcmask 121856
    %9 = vst.msk [vmem:[#allocation0] ss:$16 sm:$0x3] %vm8, %v7
    %10 = vst.msk [vmem:[#allocation0] ss:$16 sm:$0xc] %vm8, %v7
    %s11 = scalar_lea.vmem %s0, 8
    %s12 = smov 3
    %v13 = vld [vmem:[%s11] ss:$16 sm:%s12]
    %s14 = scalar_lea.vmem %s0, 8
    %s15 = smov 12
    %v16 = vld [vmem:[%s14] ss:$16 sm:%s15]
    %vm17 = vcmask 1043458
    %v18 = vsel %vm17, %v16, %v13
    %s19 = scalar_lea.vmem %s0, 8
    %s20 = smov 3
    %v21 = vld [vmem:[%s19] ss:$16 sm:%s20]
    %s22 = scalar_lea.vmem %s0, 8
    %s23 = smov 12
    %v24 = vld [vmem:[%s22] ss:$16 sm:%s23]
    %vm25 = vcmask 1043458
    %v26 = vsel %vm25, %v24, %v21
    %vm27 = vcmask 64512
    %v28 = vsel %vm27, %v26, %v18
    %29 = vrot.lane.b32.xlu0 %v28, 120
    %v30 = vpop.permute.xlu0 %29
    %vm31 = vcmask 56320
    %s32 = scalar_lea.vmem [#allocation0], 8
    %33 = vst.msk [vmem:[%s32] ss:$16 sm:$0x3] %vm31, %v30
    %s34 = scalar_lea.vmem [#allocation0], 8
    %35 = vst.msk [vmem:[%s34] ss:$16 sm:$0xc] %vm31, %v30
    %vm36 = vcmask 1048512
    %37 = vst.msk [vmem:[#allocation0] ss:$16 sm:$0x3] %vm36, %v30
    %38 = vst.msk [vmem:[#allocation0] ss:$16 sm:$0xc] %vm36, %v30
    %s39 = scalar_lea.vmem %s0, 7
    %s40 = smov 3
    %v41 = vld [vmem:[%s39] ss:$16 sm:%s40]
    %s42 = scalar_lea.vmem %s0, 7
    %s43 = smov 12
    %v44 = vld [vmem:[%s42] ss:$16 sm:%s43]
    %vm45 = vcmask 1043458
    %v46 = vsel %vm45, %v44, %v41
    %47 = vrot.lane.b32.xlu0 %v46, 105
    %v48 = vpop.permute.xlu0 %47
    %vm49 = vcmask 982856
    %50 = vst.msk [vmem:[#allocation0] ss:$16 sm:$0x3] %vm49, %v48
    %51 = vst.msk [vmem:[#allocation0] ss:$16 sm:$0xc] %vm49, %v48
    %s52 = scalar_lea.vmem %s0, 6
    %s53 = smov 3
    %v54 = vld [vmem:[%s52] ss:$16 sm:%s53]
    %s55 = scalar_lea.vmem %s0, 6
    %s56 = smov 12
    %v57 = vld [vmem:[%s55] ss:$16 sm:%s56]
    %vm58 = vcmask 1043458
    %v59 = vsel %vm58, %v57, %v54
    %60 = vrot.lane.b32.xlu0 %v59, 90
    %v61 = vpop.permute.xlu0 %60
    %vm62 = vcmask 859856
    %63 = vst.msk [vmem:[#allocation0] ss:$16 sm:$0x3] %vm62, %v61
    %64 = vst.msk [vmem:[#allocation0] ss:$16 sm:$0xc] %vm62, %v61
    %s65 = scalar_lea.vmem %s0, 14
    %s66 = smov 3
    %v67 = vld [vmem:[%s65] ss:$16 sm:%s66]
    %s68 = scalar_lea.vmem %s0, 14
    %s69 = smov 12
    %v70 = vld [vmem:[%s68] ss:$16 sm:%s69]
    %vm71 = vcmask 1043458
    %v72 = vsel %vm71, %v70, %v67
    %73 = vrot.lane.b32.xlu0 %v72, 82
    %v74 = vpop.permute.xlu0 %73
    %vm75 = vcmask 794256
    %s76 = scalar_lea.vmem [#allocation0], 8
    %77 = vst.msk [vmem:[%s76] ss:$16 sm:$0x3] %vm75, %v74
    %s78 = scalar_lea.vmem [#allocation0], 8
    %79 = vst.msk [vmem:[%s78] ss:$16 sm:$0xc] %vm75, %v74
    %s80 = scalar_lea.vmem %s0, 5
    %s81 = smov 3
    %v82 = vld [vmem:[%s80] ss:$16 sm:%s81]
    %s83 = scalar_lea.vmem %s0, 5
    %s84 = smov 12
    %v85 = vld [vmem:[%s83] ss:$16 sm:%s84]
    %vm86 = vcmask 1043458
    %v87 = vsel %vm86, %v85, %v82
    %88 = vrot.lane.b32.xlu0 %v87, 75
    %v89 = vpop.permute.xlu0 %88
    %vm90 = vcmask 736856
    %91 = vst.msk [vmem:[#allocation0] ss:$16 sm:$0x3] %vm90, %v89
    %92 = vst.msk [vmem:[#allocation0] ss:$16 sm:$0xc] %vm90, %v89
    %s93 = scalar_lea.vmem %s0, 13
    %s94 = smov 3
    %v95 = vld [vmem:[%s93] ss:$16 sm:%s94]
    %s96 = scalar_lea.vmem %s0, 13
    %s97 = smov 12
    %v98 = vld [vmem:[%s96] ss:$16 sm:%s97]
    %vm99 = vcmask 1043458
    %v100 = vsel %vm99, %v98, %v95
    %101 = vrot.lane.b32.xlu0 %v100, 67
    %v102 = vpop.permute.xlu0 %101
    %vm103 = vcmask 671256
    %s104 = scalar_lea.vmem [#allocation0], 8
    %105 = vst.msk [vmem:[%s104] ss:$16 sm:$0x3] %vm103, %v102
    %s106 = scalar_lea.vmem [#allocation0], 8
    %107 = vst.msk [vmem:[%s106] ss:$16 sm:$0xc] %vm103, %v102
    %s108 = scalar_lea.vmem %s0, 4
    %s109 = smov 3
    %v110 = vld [vmem:[%s108] ss:$16 sm:%s109]
    %s111 = scalar_lea.vmem %s0, 4
    %s112 = smov 12
    %v113 = vld [vmem:[%s111] ss:$16 sm:%s112]
    %vm114 = vcmask 1043458
    %v115 = vsel %vm114, %v113, %v110
    %116 = vrot.lane.b32.xlu0 %v115, 60
    %v117 = vpop.permute.xlu0 %116
    %vm118 = vcmask 613856
    %119 = vst.msk [vmem:[#allocation0] ss:$16 sm:$0x3] %vm118, %v117
    %120 = vst.msk [vmem:[#allocation0] ss:$16 sm:$0xc] %vm118, %v117
    %s121 = scalar_lea.vmem %s0, 12
    %s122 = smov 3
    %v123 = vld [vmem:[%s121] ss:$16 sm:%s122]
    %s124 = scalar_lea.vmem %s0, 12
    %s125 = smov 12
    %v126 = vld [vmem:[%s124] ss:$16 sm:%s125]
    %vm127 = vcmask 1043458
    %v128 = vsel %vm127, %v126, %v123
    %129 = vrot.lane.b32.xlu0 %v128, 52
    %v130 = vpop.permute.xlu0 %129
    %vm131 = vcmask 548256
    %s132 = scalar_lea.vmem [#allocation0], 8
    %133 = vst.msk [vmem:[%s132] ss:$16 sm:$0x3] %vm131, %v130
    %s134 = scalar_lea.vmem [#allocation0], 8
    %135 = vst.msk [vmem:[%s134] ss:$16 sm:$0xc] %vm131, %v130
    %s136 = scalar_lea.vmem %s0, 3
    %s137 = smov 3
    %v138 = vld [vmem:[%s136] ss:$16 sm:%s137]
    %s139 = scalar_lea.vmem %s0, 3
    %s140 = smov 12
    %v141 = vld [vmem:[%s139] ss:$16 sm:%s140]
    %vm142 = vcmask 1043458
    %v143 = vsel %vm142, %v141, %v138
    %144 = vrot.lane.b32.xlu0 %v143, 45
    %v145 = vpop.permute.xlu0 %144
    %vm146 = vcmask 490856
    %147 = vst.msk [vmem:[#allocation0] ss:$16 sm:$0x3] %vm146, %v145
    %148 = vst.msk [vmem:[#allocation0] ss:$16 sm:$0xc] %vm146, %v145
    %s149 = scalar_lea.vmem %s0, 11
    %s150 = smov 3
    %v151 = vld [vmem:[%s149] ss:$16 sm:%s150]
    %s152 = scalar_lea.vmem %s0, 11
    %s153 = smov 12
    %v154 = vld [vmem:[%s152] ss:$16 sm:%s153]
    %vm155 = vcmask 1043458
    %v156 = vsel %vm155, %v154, %v151
    %157 = vrot.lane.b32.xlu0 %v156, 37
    %v158 = vpop.permute.xlu0 %157
    %vm159 = vcmask 425256
    %s160 = scalar_lea.vmem [#allocation0], 8
    %161 = vst.msk [vmem:[%s160] ss:$16 sm:$0x3] %vm159, %v158
    %s162 = scalar_lea.vmem [#allocation0], 8
    %163 = vst.msk [vmem:[%s162] ss:$16 sm:$0xc] %vm159, %v158
    %s164 = scalar_lea.vmem %s0, 2
    %s165 = smov 3
    %v166 = vld [vmem:[%s164] ss:$16 sm:%s165]
    %s167 = scalar_lea.vmem %s0, 2
    %s168 = smov 12
    %v169 = vld [vmem:[%s167] ss:$16 sm:%s168]
    %vm170 = vcmask 1043458
    %v171 = vsel %vm170, %v169, %v166
    %172 = vrot.lane.b32.xlu0 %v171, 30
    %v173 = vpop.permute.xlu0 %172
    %vm174 = vcmask 367856
    %175 = vst.msk [vmem:[#allocation0] ss:$16 sm:$0x3] %vm174, %v173
    %176 = vst.msk [vmem:[#allocation0] ss:$16 sm:$0xc] %vm174, %v173
    %s177 = scalar_lea.vmem %s0, 10
    %s178 = smov 3
    %v179 = vld [vmem:[%s177] ss:$16 sm:%s178]
    %s180 = scalar_lea.vmem %s0, 10
    %s181 = smov 12
    %v182 = vld [vmem:[%s180] ss:$16 sm:%s181]
    %vm183 = vcmask 1043458
    %v184 = vsel %vm183, %v182, %v179
    %185 = vrot.lane.b32.xlu0 %v184, 22
    %v186 = vpop.permute.xlu0 %185
    %vm187 = vcmask 302256
    %s188 = scalar_lea.vmem [#allocation0], 8
    %189 = vst.msk [vmem:[%s188] ss:$16 sm:$0x3] %vm187, %v186
    %s190 = scalar_lea.vmem [#allocation0], 8
    %191 = vst.msk [vmem:[%s190] ss:$16 sm:$0xc] %vm187, %v186
    %s192 = scalar_lea.vmem %s0, 1
    %s193 = smov 3
    %v194 = vld [vmem:[%s192] ss:$16 sm:%s193]
    %s195 = scalar_lea.vmem %s0, 1
    %s196 = smov 12
    %v197 = vld [vmem:[%s195] ss:$16 sm:%s196]
    %vm198 = vcmask 1043458
    %v199 = vsel %vm198, %v197, %v194
    %200 = vrot.lane.b32.xlu0 %v199, 15
    %v201 = vpop.permute.xlu0 %200
    %vm202 = vcmask 244856
    %203 = vst.msk [vmem:[#allocation0] ss:$16 sm:$0x3] %vm202, %v201
    %204 = vst.msk [vmem:[#allocation0] ss:$16 sm:$0xc] %vm202, %v201
    %s205 = scalar_lea.vmem %s0, 9
    %s206 = smov 3
    %v207 = vld [vmem:[%s205] ss:$16 sm:%s206]
    %s208 = scalar_lea.vmem %s0, 9
    %s209 = smov 12
    %v210 = vld [vmem:[%s208] ss:$16 sm:%s209]
    %vm211 = vcmask 1043458
    %v212 = vsel %vm211, %v210, %v207
    %213 = vrot.lane.b32.xlu0 %v212, 7
    %v214 = vpop.permute.xlu0 %213
    %vm215 = vcmask 179256
    %s216 = scalar_lea.vmem [#allocation0], 8
    %217 = vst.msk [vmem:[%s216] ss:$16 sm:$0x3] %vm215, %v214
    %s218 = scalar_lea.vmem [#allocation0], 8
    %219 = vst.msk [vmem:[%s218] ss:$16 sm:$0xc] %vm215, %v214
    %s221 = ssub.s32 2, 1
    %v222 = vld [vmem:[#allocation0] sm:%s221]
    %s224 = ssub.s32 2, 1
    %225 = vst [vmem:[%s1] sm:%s224] %v222
    %s226 = scalar_lea.vmem [#allocation0], 8
    %v227 = vld [vmem:[%s226] sm:%s221]
    %s229 = ssub.s32 2, 1
    %s230 = scalar_lea.vmem %s1, 1
    %231 = vst [vmem:[%s230] sm:%s229] %v227
    %s232 = scalar_lea.vmem [#allocation0], 16
    %v233 = vld [vmem:[%s232] sm:%s221]
    %s235 = ssub.s32 2, 1
    %s236 = scalar_lea.vmem %s1, 2
    %237 = vst [vmem:[%s236] sm:%s235] %v233
    %s238 = scalar_lea.vmem [#allocation0], 24
    %v239 = vld [vmem:[%s238] sm:%s221]
    %s241 = ssub.s32 2, 1
    %s242 = scalar_lea.vmem %s1, 3
    %243 = vst [vmem:[%s242] sm:%s241] %v239
    %s244 = scalar_lea.vmem [#allocation0], 32
    %v245 = vld [vmem:[%s244] sm:%s221]
    %s247 = ssub.s32 2, 1
    %s248 = scalar_lea.vmem %s1, 4
    %249 = vst [vmem:[%s248] sm:%s247] %v245
    %s250 = scalar_lea.vmem [#allocation0], 40
    %v251 = vld [vmem:[%s250] sm:%s221]
    %s253 = ssub.s32 2, 1
    %s254 = scalar_lea.vmem %s1, 5
    %255 = vst [vmem:[%s254] sm:%s253] %v251
    %s256 = scalar_lea.vmem [#allocation0], 48
    %v257 = vld [vmem:[%s256] sm:%s221]
    %s259 = ssub.s32 2, 1
    %s260 = scalar_lea.vmem %s1, 6
    %261 = vst [vmem:[%s260] sm:%s259] %v257
    %s262 = scalar_lea.vmem [#allocation0], 56
    %v263 = vld [vmem:[%s262] sm:%s221]
    %s265 = ssub.s32 2, 1
    %s266 = scalar_lea.vmem %s1, 7
    %267 = vst [vmem:[%s266] sm:%s265] %v263

// kernel: _forward_impl.1
$region0: #{_forward_impl.1}
  #allocation0 [shape = 'u32[]', space=smem, size = 0x4, offset = 0x4, fixed_abs, tag = 'smem constant byte address 0x4 - core index']
  #allocation1 [shape = 'u32[72,128]{1,0:T(1,128)}', space=vmem, size = 0x9000, scoped, tag = 'internal scratch']
  #allocation2 [shape = 'bf16[64,452]{1,0:T(8,128)(2,1)}', space=vmem, size = 0x10000, scoped, tag = 'scratch operand']
  #allocation3 [shape = 'bf16[256,420]{1,0:T(8,128)(2,1)}', space=vmem, size = 0x40000, scoped, tag = 'scratch operand']
  %s0 = inlined_call_operand.vmem [shape: f32[2,4,452], index: 0, kind: input, shape index: {}]
  %s1 = inlined_call_operand.vmem [shape: f32[64,4], index: 1, kind: input, shape index: {}]
  %s2 = inlined_call_operand.vmem [shape: bf16[64,256], index: 2, kind: input, shape index: {}]
  %s3 = inlined_call_operand.vmem [shape: bf16[32,64], index: 3, kind: input, shape index: {}]
  %s4 = inlined_call_operand.vmem [shape: bf16[16,32], index: 4, kind: input, shape index: {}]
  %s5 = inlined_call_operand.vmem [shape: f32[352,1], index: 5, kind: input, shape index: {}]
  %s6 = inlined_call_operand.vmem [shape: f32[2,16,420], index: 6, kind: output, shape index: {}]
  %s7 = sld [smem:[#allocation0]]
  $region57: #{_forward_impl.1} parent=0
    _
  %s9 = ssub.s32 1, %s7
  %s10 = scalar_select 0, %s9, %s7
  loop: start=0, step=1, limit=4
  $region2: #{_forward_impl.1} parent=0 // loop_pre_header
    _
  $region3: #{_forward_impl.1} parent=0 // loop_header
    %s12 = sphi 0, %s16
    %p13 = scmp.ge.s32.totalorder %s12, 4
    %s22 = sphi 0, %s24
    %s25 = sphi 0, %s22
    %s26 = sphi 0, %s25
    %s42 = sphi 0, %s26
    %s46 = sphi 0, %s46
    %s48 = sphi 0, %s46
    %s49 = sphi 0, %s48
    %s63 = sphi 0, %s49
    %s67 = sphi 0, %s67
    %s69 = sphi 0, %s67
    %s70 = sphi 0, %s69
    %s84 = sphi 0, %s70
    %s88 = sphi 0, %s88
    %s90 = sphi 0, %s88
    %s91 = sphi 0, %s90
    %s105 = sphi 0, %s91
    %s109 = sphi 0, %s109
    %s111 = sphi 0, %s109
    %s112 = sphi 0, %s111
    %s126 = sphi 0, %s112
    %s130 = sphi 0, %s130
    %s132 = sphi 0, %s130
    %s133 = sphi 0, %s132
    %s147 = sphi 0, %s133
    %s153 = sphi 0, %s155
    %s156 = sphi 0, %s153
    %s157 = sphi 0, %s156
    %s173 = sphi 0, %s157
  $region4: #{_forward_impl.1} parent=0 // loop_header_branch
    %15 = sbr.rel (%p13) target = $region8
  $region5: #{_forward_impl.1} parent=0 // loop_body
    %s17 = ssub.s32 %s12, 1
    %s18 = ssub.s32 %s12, 2
    %s19 = sadd.s32 %s12, 1
    %s20 = ssub.s32 %s12, %s19
    %p21 = scmp.eq.s32.totalorder %s20, 0
    %s23 = sadd.s32 %s22, 1
    %s24 = scalar_select %p21, %s22, %s23
    %p27 = pneg %p21
    %p28 = scmp.eq.s32.totalorder %s12, 1
    %p29 = por %p27, %p28
    %p30 = scmp.ne.s32.totalorder %s22, %s25
    %p31 = scmp.eq.s32.totalorder %s12, 0
    %p32 = por %p30, %p31
    %p33 = scmp.ne.s32.totalorder %s22, %s25
    %p34 = scmp.eq.s32.totalorder %s17, 1
    %p35 = por %p33, %p34
    %p36 = scmp.ne.s32.totalorder %s25, %s26
    %p37 = scmp.eq.s32.totalorder %s17, 0
    %p38 = por %p36, %p37
    %p39 = scmp.ne.s32.totalorder %s25, %s26
    %p40 = scmp.eq.s32.totalorder %s18, 1
    %p41 = por %p39, %p40
    %p43 = scmp.ne.s32.totalorder %s26, %s42
    %p44 = scmp.eq.s32.totalorder %s18, 0
    %p45 = por %p43, %p44
    %s47 = sadd.s32 %s46, 1
    %p50 = scmp.eq.s32.totalorder %s12, 1
    %p51 = scmp.ne.s32.totalorder %s46, %s48
    %p52 = scmp.eq.s32.totalorder %s12, 0
    %p53 = por %p51, %p52
    %p54 = scmp.ne.s32.totalorder %s46, %s48
    %p55 = scmp.eq.s32.totalorder %s17, 1
    %p56 = por %p54, %p55
    %p57 = scmp.ne.s32.totalorder %s48, %s49
    %p58 = scmp.eq.s32.totalorder %s17, 0
    %p59 = por %p57, %p58
    %p60 = scmp.ne.s32.totalorder %s48, %s49
    %p61 = scmp.eq.s32.totalorder %s18, 1
    %p62 = por %p60, %p61
    %p64 = scmp.ne.s32.totalorder %s49, %s63
    %p65 = scmp.eq.s32.totalorder %s18, 0
    %p66 = por %p64, %p65
    %s68 = sadd.s32 %s67, 1
    %p71 = scmp.eq.s32.totalorder %s12, 1
    %p72 = scmp.ne.s32.totalorder %s67, %s69
    %p73 = scmp.eq.s32.totalorder %s12, 0
    %p74 = por %p72, %p73
    %p75 = scmp.ne.s32.totalorder %s67, %s69
    %p76 = scmp.eq.s32.totalorder %s17, 1
    %p77 = por %p75, %p76
    %p78 = scmp.ne.s32.totalorder %s69, %s70
    %p79 = scmp.eq.s32.totalorder %s17, 0
    %p80 = por %p78, %p79
    %p81 = scmp.ne.s32.totalorder %s69, %s70
    %p82 = scmp.eq.s32.totalorder %s18, 1
    %p83 = por %p81, %p82
    %p85 = scmp.ne.s32.totalorder %s70, %s84
    %p86 = scmp.eq.s32.totalorder %s18, 0
    %p87 = por %p85, %p86
    %s89 = sadd.s32 %s88, 1
    %p92 = scmp.eq.s32.totalorder %s12, 1
    %p93 = scmp.ne.s32.totalorder %s88, %s90
    %p94 = scmp.eq.s32.totalorder %s12, 0
    %p95 = por %p93, %p94
    %p96 = scmp.ne.s32.totalorder %s88, %s90
    %p97 = scmp.eq.s32.totalorder %s17, 1
    %p98 = por %p96, %p97
    %p99 = scmp.ne.s32.totalorder %s90, %s91
    %p100 = scmp.eq.s32.totalorder %s17, 0
    %p101 = por %p99, %p100
    %p102 = scmp.ne.s32.totalorder %s90, %s91
    %p103 = scmp.eq.s32.totalorder %s18, 1
    %p104 = por %p102, %p103
    %p106 = scmp.ne.s32.totalorder %s91, %s105
    %p107 = scmp.eq.s32.totalorder %s18, 0
    %p108 = por %p106, %p107
    %s110 = sadd.s32 %s109, 1
    %p113 = scmp.eq.s32.totalorder %s12, 1
    %p114 = scmp.ne.s32.totalorder %s109, %s111
    %p115 = scmp.eq.s32.totalorder %s12, 0
    %p116 = por %p114, %p115
    %p117 = scmp.ne.s32.totalorder %s109, %s111
    %p118 = scmp.eq.s32.totalorder %s17, 1
    %p119 = por %p117, %p118
    %p120 = scmp.ne.s32.totalorder %s111, %s112
    %p121 = scmp.eq.s32.totalorder %s17, 0
    %p122 = por %p120, %p121
    %p123 = scmp.ne.s32.totalorder %s111, %s112
    %p124 = scmp.eq.s32.totalorder %s18, 1
    %p125 = por %p123, %p124
    %p127 = scmp.ne.s32.totalorder %s112, %s126
    %p128 = scmp.eq.s32.totalorder %s18, 0
    %p129 = por %p127, %p128
    %s131 = sadd.s32 %s130, 1
    %p134 = scmp.eq.s32.totalorder %s12, 1
    %p135 = scmp.ne.s32.totalorder %s130, %s132
    %p136 = scmp.eq.s32.totalorder %s12, 0
    %p137 = por %p135, %p136
    %p138 = scmp.ne.s32.totalorder %s130, %s132
    %p139 = scmp.eq.s32.totalorder %s17, 1
    %p140 = por %p138, %p139
    %p141 = scmp.ne.s32.totalorder %s132, %s133
    %p142 = scmp.eq.s32.totalorder %s17, 0
    %p143 = por %p141, %p142
    %p144 = scmp.ne.s32.totalorder %s132, %s133
    %p145 = scmp.eq.s32.totalorder %s18, 1
    %p146 = por %p144, %p145
    %p148 = scmp.ne.s32.totalorder %s133, %s147
    %p149 = scmp.eq.s32.totalorder %s18, 0
    %p150 = por %p148, %p149
    %s151 = ssub.s32 %s12, %s19
    %p152 = scmp.eq.s32.totalorder %s151, 0
    %s154 = sadd.s32 %s153, 1
    %s155 = scalar_select %p152, %s153, %s154
    %p158 = pneg %p152
    %p159 = scmp.eq.s32.totalorder %s12, 1
    %p160 = por %p158, %p159
    %p161 = scmp.ne.s32.totalorder %s153, %s156
    %p162 = scmp.eq.s32.totalorder %s12, 0
    %p163 = por %p161, %p162
    %p164 = scmp.ne.s32.totalorder %s153, %s156
    %p165 = scmp.eq.s32.totalorder %s17, 1
    %p166 = por %p164, %p165
    %p167 = scmp.ne.s32.totalorder %s156, %s157
    %p168 = scmp.eq.s32.totalorder %s17, 0
    %p169 = por %p167, %p168
    %p170 = scmp.ne.s32.totalorder %s156, %s157
    %p171 = scmp.eq.s32.totalorder %s18, 1
    %p172 = por %p170, %p171
    %p174 = scmp.ne.s32.totalorder %s157, %s173
    %p175 = scmp.eq.s32.totalorder %s18, 0
    %p176 = por %p174, %p175
    %p177 = scmp.le.s32.totalorder 1, %s12
    %p178 = scmp.lt.s32.totalorder %s12, 3
    %p179 = pnand %p177, %p178
    %p180 = pneg %p179
    // Predicated region
    $region9: #{_forward_impl.1} parent=5 // pred_check
      _
    $region10: #{_forward_impl.1} parent=5 // pred_check_branch
      %182 = sbr.rel (%p179) target = $region12
    $region11: #{_forward_impl.1} parent=5 // pred_region
      %s183 = ssub.s32 %s12, 1
      // Predicated region
      $region13: #{_forward_impl.1} parent=11 // pred_check
        %p184 = pneg %p59
      $region14: #{_forward_impl.1} parent=11 // pred_check_branch
        %186 = sbr.rel (%p184) target = $region16
      $region15: #{_forward_impl.1} parent=11 // pred_region
        _
      $region16: #{_forward_impl.1} parent=11 // pred_fallthru
        _
      // Predicated region
      $region17: #{_forward_impl.1} parent=11 // pred_check
        %p187 = pneg %p80
      $region18: #{_forward_impl.1} parent=11 // pred_check_branch
        %189 = sbr.rel (%p187) target = $region20
      $region19: #{_forward_impl.1} parent=11 // pred_region
        _
      $region20: #{_forward_impl.1} parent=11 // pred_fallthru
        _
      // Predicated region
      $region21: #{_forward_impl.1} parent=11 // pred_check
        %p190 = pneg %p101
      $region22: #{_forward_impl.1} parent=11 // pred_check_branch
        %192 = sbr.rel (%p190) target = $region24
      $region23: #{_forward_impl.1} parent=11 // pred_region
        _
      $region24: #{_forward_impl.1} parent=11 // pred_fallthru
        _
      // Predicated region
      $region25: #{_forward_impl.1} parent=11 // pred_check
        %p193 = pneg %p122
      $region26: #{_forward_impl.1} parent=11 // pred_check_branch
        %195 = sbr.rel (%p193) target = $region28
      $region27: #{_forward_impl.1} parent=11 // pred_region
        _
      $region28: #{_forward_impl.1} parent=11 // pred_fallthru
        _
      // Predicated region
      $region29: #{_forward_impl.1} parent=11 // pred_check
        %p196 = pneg %p143
      $region30: #{_forward_impl.1} parent=11 // pred_check_branch
        %198 = sbr.rel (%p196) target = $region32
      $region31: #{_forward_impl.1} parent=11 // pred_region
        _
      $region32: #{_forward_impl.1} parent=11 // pred_fallthru
        _
    $region12: #{_forward_impl.1} parent=5 // pred_fallthru
      _
    %p199 = scmp.lt.s32.totalorder %s12, 2
    // Predicated region
    $region33: #{_forward_impl.1} parent=5 // pred_check
      %p200 = pneg %p199
    $region34: #{_forward_impl.1} parent=5 // pred_check_branch
      %202 = sbr.rel (%p200) target = $region36
    $region35: #{_forward_impl.1} parent=5 // pred_region
      // Predicated region
      $region37: #{_forward_impl.1} parent=35 // pred_check
        %p203 = pneg %p32
      $region38: #{_forward_impl.1} parent=35 // pred_check_branch
        %205 = sbr.rel (%p203) target = $region40
      $region39: #{_forward_impl.1} parent=35 // pred_region
        %p206 = scmp.lt.s32.totalorder %s12, 1
        %s207 = scalar_select %p206, %s12, 1
        %s208 = smul.addr %s207, 4
        %s209 = smul.addr %s208, 4
        %s210 = scalar_lea.vmem %s0, %s209
      $region40: #{_forward_impl.1} parent=35 // pred_fallthru
        _
    $region36: #{_forward_impl.1} parent=5 // pred_fallthru
      _
    %p211 = scmp.le.s32.totalorder 1, %s12
    %p212 = scmp.lt.s32.totalorder %s12, 3
    %p213 = pnand %p211, %p212
    %p214 = pneg %p213
    // Predicated region
    $region41: #{_forward_impl.1} parent=5 // pred_check
      _
    $region42: #{_forward_impl.1} parent=5 // pred_check_branch
      %216 = sbr.rel (%p213) target = $region44
    $region43: #{_forward_impl.1} parent=5 // pred_region
      %s217 = ssub.s32 %s12, 1
      %p218 = scmp.lt.s32.totalorder %s17, 1
      %s219 = scalar_select %p218, %s17, 1
      %s220 = smul.addr %s219, 4
      %s221 = smul.addr %s220, 4
      %s222 = scalar_lea.vmem %s0, %s221
      %p223 = pneg %p38
      %p224 = pneg %p35
      %p225 = pneg %p59
      %p226 = pneg %p56
      %p227 = pneg %p80
      %p228 = pneg %p77
      %p229 = pneg %p101
      %p230 = pneg %p98
      %p231 = pneg %p122
      %p232 = pneg %p119
      %p233 = pneg %p143
      %p234 = pneg %p140
      %p235 = pneg %p169
      %p236 = pneg %p166
      %p237 = scmp.lt.s32.totalorder %s17, 1
      %s238 = scalar_select %p237, %s17, 1
      %s239 = smul.addr %s238, 8
      %s240 = smul.addr %s239, 8
      %s241 = scalar_lea.vmem %s6, %s240
      %p242 = scmp.lt.s32.totalorder %s17, 1
      %s243 = scalar_select %p242, %s17, 1
      %s244 = smul.addr %s243, 4
      %s245 = smul.addr %s244, 4
      %s246 = scalar_lea.vmem %s0, %s245
      %p247 = scmp.lt.s32.totalorder %s17, 1
      %s248 = scalar_select %p247, %s17, 1
      %s249 = smul.addr %s248, 8
      %s250 = smul.addr %s249, 8
      %s251 = scalar_lea.vmem %s6, %s250
      %v253 = vld [vmem:[%s246] sm:$0xff]
      %v254 = vld [vmem:[%s246 + $0x8] sm:$0xff]
      %v255 = vld [vmem:[%s1] sm:$0xff]
      %v256 = vld [vmem:[%s1 + $0x8] sm:$0xff]
      %v257 = vld [vmem:[%s1 + $0x10] sm:$0xff]
      %v258 = vld [vmem:[%s1 + $0x18] sm:$0xff]
      %v259 = vld [vmem:[%s1 + $0x20] sm:$0xff]
      %v260 = vld [vmem:[%s1 + $0x28] sm:$0xff]
      %v261 = vld [vmem:[%s1 + $0x30] sm:$0xff]
      %v262 = vld [vmem:[%s1 + $0x38] sm:$0xff]
      %264 = vset.pattern.permute.xlu0 0
      %265 = vperm.xlu0 %264, %v255
      %v266 = vpop.permute.xlu0 %265
      %269 = vset.pattern.permute.xlu0 0
      %270 = vperm.xlu0 %269, %v256
      %v271 = vpop.permute.xlu0 %270
      %274 = vset.pattern.permute.xlu0 0
      %275 = vperm.xlu0 %274, %v257
      %v276 = vpop.permute.xlu0 %275
      %279 = vset.pattern.permute.xlu0 0
      %280 = vperm.xlu0 %279, %v258
      %v281 = vpop.permute.xlu0 %280
      %284 = vset.pattern.permute.xlu0 0
      %285 = vperm.xlu0 %284, %v259
      %v286 = vpop.permute.xlu0 %285
      %289 = vset.pattern.permute.xlu0 0
      %290 = vperm.xlu0 %289, %v260
      %v291 = vpop.permute.xlu0 %290
      %294 = vset.pattern.permute.xlu0 0
      %295 = vperm.xlu0 %294, %v261
      %v296 = vpop.permute.xlu0 %295
      %299 = vset.pattern.permute.xlu0 0
      %300 = vperm.xlu0 %299, %v262
      %v301 = vpop.permute.xlu0 %300
      %v305 = vperm.slane %v253, 0
      %v306 = vperm.slane %v253, 4
      %v307 = vperm.slane %v254, 0
      %v308 = vperm.slane %v254, 4
      %v313 = vperm.slane %v305, 0
      %v314 = vperm.slane %v306, 0
      %v315 = vperm.slane %v307, 0
      %v316 = vperm.slane %v308, 0
      %v317 = vmul.f32 %v266, %v313
      %v318 = vmul.f32 %v266, %v314
      %v319 = vmul.f32 %v266, %v315
      %v320 = vmul.f32 %v266, %v316
      %v321 = vmul.f32 %v271, %v313
      %v322 = vmul.f32 %v271, %v314
      %v323 = vmul.f32 %v271, %v315
      %v324 = vmul.f32 %v271, %v316
      %v325 = vmul.f32 %v276, %v313
      %v326 = vmul.f32 %v276, %v314
      %v327 = vmul.f32 %v276, %v315
      %v328 = vmul.f32 %v276, %v316
      %v329 = vmul.f32 %v281, %v313
      %v330 = vmul.f32 %v281, %v314
      %v331 = vmul.f32 %v281, %v315
      %v332 = vmul.f32 %v281, %v316
      %v333 = vmul.f32 %v286, %v313
      %v334 = vmul.f32 %v286, %v314
      %v335 = vmul.f32 %v286, %v315
      %v336 = vmul.f32 %v286, %v316
      %v337 = vmul.f32 %v291, %v313
      %v338 = vmul.f32 %v291, %v314
      %v339 = vmul.f32 %v291, %v315
      %v340 = vmul.f32 %v291, %v316
      %v341 = vmul.f32 %v296, %v313
      %v342 = vmul.f32 %v296, %v314
      %v343 = vmul.f32 %v296, %v315
      %v344 = vmul.f32 %v296, %v316
      %v345 = vmul.f32 %v301, %v313
      %v346 = vmul.f32 %v301, %v314
      %v347 = vmul.f32 %v301, %v315
      %v348 = vmul.f32 %v301, %v316
      %349 = vset.pattern.permute.xlu0 1
      %350 = vperm.xlu0 %349, %v255
      %v351 = vpop.permute.xlu0 %350
      %353 = vset.pattern.permute.xlu0 1
      %354 = vperm.xlu0 %353, %v256
      %v355 = vpop.permute.xlu0 %354
      %357 = vset.pattern.permute.xlu0 1
      %358 = vperm.xlu0 %357, %v257
      %v359 = vpop.permute.xlu0 %358
      %361 = vset.pattern.permute.xlu0 1
      %362 = vperm.xlu0 %361, %v258
      %v363 = vpop.permute.xlu0 %362
      %365 = vset.pattern.permute.xlu0 1
      %366 = vperm.xlu0 %365, %v259
      %v367 = vpop.permute.xlu0 %366
      %369 = vset.pattern.permute.xlu0 1
      %370 = vperm.xlu0 %369, %v260
      %v371 = vpop.permute.xlu0 %370
      %373 = vset.pattern.permute.xlu0 1
      %374 = vperm.xlu0 %373, %v261
      %v375 = vpop.permute.xlu0 %374
      %377 = vset.pattern.permute.xlu0 1
      %378 = vperm.xlu0 %377, %v262
      %v379 = vpop.permute.xlu0 %378
      %v381 = vperm.slane %v253, 1
      %v382 = vperm.slane %v253, 5
      %v383 = vperm.slane %v254, 1
      %v384 = vperm.slane %v254, 5
      %v389 = vperm.slane %v381, 1
      %v390 = vperm.slane %v382, 1
      %v391 = vperm.slane %v383, 1
      %v392 = vperm.slane %v384, 1
      %v393 = vmul.f32 %v351, %v389
      %v394 = vmul.f32 %v351, %v390
      %v395 = vmul.f32 %v351, %v391
      %v396 = vmul.f32 %v351, %v392
      %v397 = vmul.f32 %v355, %v389
      %v398 = vmul.f32 %v355, %v390
      %v399 = vmul.f32 %v355, %v391
      %v400 = vmul.f32 %v355, %v392
      %v401 = vmul.f32 %v359, %v389
      %v402 = vmul.f32 %v359, %v390
      %v403 = vmul.f32 %v359, %v391
      %v404 = vmul.f32 %v359, %v392
      %v405 = vmul.f32 %v363, %v389
      %v406 = vmul.f32 %v363, %v390
      %v407 = vmul.f32 %v363, %v391
      %v408 = vmul.f32 %v363, %v392
      %v409 = vmul.f32 %v367, %v389
      %v410 = vmul.f32 %v367, %v390
      %v411 = vmul.f32 %v367, %v391
      %v412 = vmul.f32 %v367, %v392
      %v413 = vmul.f32 %v371, %v389
      %v414 = vmul.f32 %v371, %v390
      %v415 = vmul.f32 %v371, %v391
      %v416 = vmul.f32 %v371, %v392
      %v417 = vmul.f32 %v375, %v389
      %v418 = vmul.f32 %v375, %v390
      %v419 = vmul.f32 %v375, %v391
      %v420 = vmul.f32 %v375, %v392
      %v421 = vmul.f32 %v379, %v389
      %v422 = vmul.f32 %v379, %v390
      %v423 = vmul.f32 %v379, %v391
      %v424 = vmul.f32 %v379, %v392
      %v425 = vadd.f32 %v317, %v393
      %v426 = vadd.f32 %v318, %v394
      %v427 = vadd.f32 %v319, %v395
      %v428 = vadd.f32 %v320, %v396
      %v429 = vadd.f32 %v321, %v397
      %v430 = vadd.f32 %v322, %v398
      %v431 = vadd.f32 %v323, %v399
      %v432 = vadd.f32 %v324, %v400
      %v433 = vadd.f32 %v325, %v401
      %v434 = vadd.f32 %v326, %v402
      %v435 = vadd.f32 %v327, %v403
      %v436 = vadd.f32 %v328, %v404
      %v437 = vadd.f32 %v329, %v405
      %v438 = vadd.f32 %v330, %v406
      %v439 = vadd.f32 %v331, %v407
      %v440 = vadd.f32 %v332, %v408
      %v441 = vadd.f32 %v333, %v409
      %v442 = vadd.f32 %v334, %v410
      %v443 = vadd.f32 %v335, %v411
      %v444 = vadd.f32 %v336, %v412
      %v445 = vadd.f32 %v337, %v413
      %v446 = vadd.f32 %v338, %v414
      %v447 = vadd.f32 %v339, %v415
      %v448 = vadd.f32 %v340, %v416
      %v449 = vadd.f32 %v341, %v417
      %v450 = vadd.f32 %v342, %v418
      %v451 = vadd.f32 %v343, %v419
      %v452 = vadd.f32 %v344, %v420
      %v453 = vadd.f32 %v345, %v421
      %v454 = vadd.f32 %v346, %v422
      %v455 = vadd.f32 %v347, %v423
      %v456 = vadd.f32 %v348, %v424
      %457 = vset.pattern.permute.xlu0 2
      %458 = vperm.xlu0 %457, %v255
      %v459 = vpop.permute.xlu0 %458
      %461 = vset.pattern.permute.xlu0 2
      %462 = vperm.xlu0 %461, %v256
      %v463 = vpop.permute.xlu0 %462
      %465 = vset.pattern.permute.xlu0 2
      %466 = vperm.xlu0 %465, %v257
      %v467 = vpop.permute.xlu0 %466
      %469 = vset.pattern.permute.xlu0 2
      %470 = vperm.xlu0 %469, %v258
      %v471 = vpop.permute.xlu0 %470
      %473 = vset.pattern.permute.xlu0 2
      %474 = vperm.xlu0 %473, %v259
      %v475 = vpop.permute.xlu0 %474
      %477 = vset.pattern.permute.xlu0 2
      %478 = vperm.xlu0 %477, %v260
      %v479 = vpop.permute.xlu0 %478
      %481 = vset.pattern.permute.xlu0 2
      %482 = vperm.xlu0 %481, %v261
      %v483 = vpop.permute.xlu0 %482
      %485 = vset.pattern.permute.xlu0 2
      %486 = vperm.xlu0 %485, %v262
      %v487 = vpop.permute.xlu0 %486
      %v489 = vperm.slane %v253, 2
      %v490 = vperm.slane %v253, 6
      %v491 = vperm.slane %v254, 2
      %v492 = vperm.slane %v254, 6
      %v497 = vperm.slane %v489, 2
      %v498 = vperm.slane %v490, 2
      %v499 = vperm.slane %v491, 2
      %v500 = vperm.slane %v492, 2
      %v501 = vmul.f32 %v459, %v497
      %v502 = vmul.f32 %v459, %v498
      %v503 = vmul.f32 %v459, %v499
      %v504 = vmul.f32 %v459, %v500
      %v505 = vmul.f32 %v463, %v497
      %v506 = vmul.f32 %v463, %v498
      %v507 = vmul.f32 %v463, %v499
      %v508 = vmul.f32 %v463, %v500
      %v509 = vmul.f32 %v467, %v497
      %v510 = vmul.f32 %v467, %v498
      %v511 = vmul.f32 %v467, %v499
      %v512 = vmul.f32 %v467, %v500
      %v513 = vmul.f32 %v471, %v497
      %v514 = vmul.f32 %v471, %v498
      %v515 = vmul.f32 %v471, %v499
      %v516 = vmul.f32 %v471, %v500
      %v517 = vmul.f32 %v475, %v497
      %v518 = vmul.f32 %v475, %v498
      %v519 = vmul.f32 %v475, %v499
      %v520 = vmul.f32 %v475, %v500
      %v521 = vmul.f32 %v479, %v497
      %v522 = vmul.f32 %v479, %v498
      %v523 = vmul.f32 %v479, %v499
      %v524 = vmul.f32 %v479, %v500
      %v525 = vmul.f32 %v483, %v497
      %v526 = vmul.f32 %v483, %v498
      %v527 = vmul.f32 %v483, %v499
      %v528 = vmul.f32 %v483, %v500
      %v529 = vmul.f32 %v487, %v497
      %v530 = vmul.f32 %v487, %v498
      %v531 = vmul.f32 %v487, %v499
      %v532 = vmul.f32 %v487, %v500
      %v533 = vadd.f32 %v425, %v501
      %v534 = vadd.f32 %v426, %v502
      %v535 = vadd.f32 %v427, %v503
      %v536 = vadd.f32 %v428, %v504
      %v537 = vadd.f32 %v429, %v505
      %v538 = vadd.f32 %v430, %v506
      %v539 = vadd.f32 %v431, %v507
      %v540 = vadd.f32 %v432, %v508
      %v541 = vadd.f32 %v433, %v509
      %v542 = vadd.f32 %v434, %v510
      %v543 = vadd.f32 %v435, %v511
      %v544 = vadd.f32 %v436, %v512
      %v545 = vadd.f32 %v437, %v513
      %v546 = vadd.f32 %v438, %v514
      %v547 = vadd.f32 %v439, %v515
      %v548 = vadd.f32 %v440, %v516
      %v549 = vadd.f32 %v441, %v517
      %v550 = vadd.f32 %v442, %v518
      %v551 = vadd.f32 %v443, %v519
      %v552 = vadd.f32 %v444, %v520
      %v553 = vadd.f32 %v445, %v521
      %v554 = vadd.f32 %v446, %v522
      %v555 = vadd.f32 %v447, %v523
      %v556 = vadd.f32 %v448, %v524
      %v557 = vadd.f32 %v449, %v525
      %v558 = vadd.f32 %v450, %v526
      %v559 = vadd.f32 %v451, %v527
      %v560 = vadd.f32 %v452, %v528
      %v561 = vadd.f32 %v453, %v529
      %v562 = vadd.f32 %v454, %v530
      %v563 = vadd.f32 %v455, %v531
      %v564 = vadd.f32 %v456, %v532
      %565 = vset.pattern.permute.xlu0 3
      %566 = vperm.xlu0 %565, %v255
      %v567 = vpop.permute.xlu0 %566
      %569 = vset.pattern.permute.xlu0 3
      %570 = vperm.xlu0 %569, %v256
      %v571 = vpop.permute.xlu0 %570
      %573 = vset.pattern.permute.xlu0 3
      %574 = vperm.xlu0 %573, %v257
      %v575 = vpop.permute.xlu0 %574
      %577 = vset.pattern.permute.xlu0 3
      %578 = vperm.xlu0 %577, %v258
      %v579 = vpop.permute.xlu0 %578
      %581 = vset.pattern.permute.xlu0 3
      %582 = vperm.xlu0 %581, %v259
      %v583 = vpop.permute.xlu0 %582
      %585 = vset.pattern.permute.xlu0 3
      %586 = vperm.xlu0 %585, %v260
      %v587 = vpop.permute.xlu0 %586
      %589 = vset.pattern.permute.xlu0 3
      %590 = vperm.xlu0 %589, %v261
      %v591 = vpop.permute.xlu0 %590
      %593 = vset.pattern.permute.xlu0 3
      %594 = vperm.xlu0 %593, %v262
      %v595 = vpop.permute.xlu0 %594
      %v597 = vperm.slane %v253, 3
      %v598 = vperm.slane %v253, 7
      %v599 = vperm.slane %v254, 3
      %v600 = vperm.slane %v254, 7
      %v605 = vperm.slane %v597, 3
      %v606 = vperm.slane %v598, 3
      %v607 = vperm.slane %v599, 3
      %v608 = vperm.slane %v600, 3
      %v609 = vmul.f32 %v567, %v605
      %v610 = vmul.f32 %v567, %v606
      %v611 = vmul.f32 %v567, %v607
      %v612 = vmul.f32 %v567, %v608
      %v613 = vmul.f32 %v571, %v605
      %v614 = vmul.f32 %v571, %v606
      %v615 = vmul.f32 %v571, %v607
      %v616 = vmul.f32 %v571, %v608
      %v617 = vmul.f32 %v575, %v605
      %v618 = vmul.f32 %v575, %v606
      %v619 = vmul.f32 %v575, %v607
      %v620 = vmul.f32 %v575, %v608
      %v621 = vmul.f32 %v579, %v605
      %v622 = vmul.f32 %v579, %v606
      %v623 = vmul.f32 %v579, %v607
      %v624 = vmul.f32 %v579, %v608
      %v625 = vmul.f32 %v583, %v605
      %v626 = vmul.f32 %v583, %v606
      %v627 = vmul.f32 %v583, %v607
      %v628 = vmul.f32 %v583, %v608
      %v629 = vmul.f32 %v587, %v605
      %v630 = vmul.f32 %v587, %v606
      %v631 = vmul.f32 %v587, %v607
      %v632 = vmul.f32 %v587, %v608
      %v633 = vmul.f32 %v591, %v605
      %v634 = vmul.f32 %v591, %v606
      %v635 = vmul.f32 %v591, %v607
      %v636 = vmul.f32 %v591, %v608
      %v637 = vmul.f32 %v595, %v605
      %v638 = vmul.f32 %v595, %v606
      %v639 = vmul.f32 %v595, %v607
      %v640 = vmul.f32 %v595, %v608
      %v641 = vadd.f32 %v533, %v609
      %v642 = vadd.f32 %v534, %v610
      %v643 = vadd.f32 %v535, %v611
      %v644 = vadd.f32 %v536, %v612
      %v645 = vadd.f32 %v537, %v613
      %v646 = vadd.f32 %v538, %v614
      %v647 = vadd.f32 %v539, %v615
      %v648 = vadd.f32 %v540, %v616
      %v649 = vadd.f32 %v541, %v617
      %v650 = vadd.f32 %v542, %v618
      %v651 = vadd.f32 %v543, %v619
      %v652 = vadd.f32 %v544, %v620
      %v653 = vadd.f32 %v545, %v621
      %v654 = vadd.f32 %v546, %v622
      %v655 = vadd.f32 %v547, %v623
      %v656 = vadd.f32 %v548, %v624
      %v657 = vadd.f32 %v549, %v625
      %v658 = vadd.f32 %v550, %v626
      %v659 = vadd.f32 %v551, %v627
      %v660 = vadd.f32 %v552, %v628
      %v661 = vadd.f32 %v553, %v629
      %v662 = vadd.f32 %v554, %v630
      %v663 = vadd.f32 %v555, %v631
      %v664 = vadd.f32 %v556, %v632
      %v665 = vadd.f32 %v557, %v633
      %v666 = vadd.f32 %v558, %v634
      %v667 = vadd.f32 %v559, %v635
      %v668 = vadd.f32 %v560, %v636
      %v669 = vadd.f32 %v561, %v637
      %v670 = vadd.f32 %v562, %v638
      %v671 = vadd.f32 %v563, %v639
      %v672 = vadd.f32 %v564, %v640
      %v673 = vld [vmem:[%s5] sm:$0xff]
      %v674 = vld [vmem:[%s5 + $0x8] sm:$0xff]
      %v675 = vld [vmem:[%s5 + $0x10] sm:$0xff]
      %v676 = vld [vmem:[%s5 + $0x18] sm:$0xff]
      %v677 = vld [vmem:[%s5 + $0x20] sm:$0xff]
      %v678 = vld [vmem:[%s5 + $0x28] sm:$0xff]
      %v679 = vld [vmem:[%s5 + $0x30] sm:$0xff]
      %v680 = vld [vmem:[%s5 + $0x38] sm:$0xff]
      %682 = vset.pattern.permute.xlu0 0
      %683 = vperm.xlu0 %682, %v673
      %v684 = vpop.permute.xlu0 %683
      %687 = vset.pattern.permute.xlu0 0
      %688 = vperm.xlu0 %687, %v674
      %v689 = vpop.permute.xlu0 %688
      %692 = vset.pattern.permute.xlu0 0
      %693 = vperm.xlu0 %692, %v675
      %v694 = vpop.permute.xlu0 %693
      %697 = vset.pattern.permute.xlu0 0
      %698 = vperm.xlu0 %697, %v676
      %v699 = vpop.permute.xlu0 %698
      %702 = vset.pattern.permute.xlu0 0
      %703 = vperm.xlu0 %702, %v677
      %v704 = vpop.permute.xlu0 %703
      %707 = vset.pattern.permute.xlu0 0
      %708 = vperm.xlu0 %707, %v678
      %v709 = vpop.permute.xlu0 %708
      %712 = vset.pattern.permute.xlu0 0
      %713 = vperm.xlu0 %712, %v679
      %v714 = vpop.permute.xlu0 %713
      %717 = vset.pattern.permute.xlu0 0
      %718 = vperm.xlu0 %717, %v680
      %v719 = vpop.permute.xlu0 %718
      %v721 = vmul.f32 %v641, %v684
      %v722 = vmul.f32 %v642, %v684
      %v723 = vmul.f32 %v643, %v684
      %v724 = vmul.f32 %v644, %v684
      %v725 = vmul.f32 %v645, %v689
      %v726 = vmul.f32 %v646, %v689
      %v727 = vmul.f32 %v647, %v689
      %v728 = vmul.f32 %v648, %v689
      %v729 = vmul.f32 %v649, %v694
      %v730 = vmul.f32 %v650, %v694
      %v731 = vmul.f32 %v651, %v694
      %v732 = vmul.f32 %v652, %v694
      %v733 = vmul.f32 %v653, %v699
      %v734 = vmul.f32 %v654, %v699
      %v735 = vmul.f32 %v655, %v699
      %v736 = vmul.f32 %v656, %v699
      %v737 = vmul.f32 %v657, %v704
      %v738 = vmul.f32 %v658, %v704
      %v739 = vmul.f32 %v659, %v704
      %v740 = vmul.f32 %v660, %v704
      %v741 = vmul.f32 %v661, %v709
      %v742 = vmul.f32 %v662, %v709
      %v743 = vmul.f32 %v663, %v709
      %v744 = vmul.f32 %v664, %v709
      %v745 = vmul.f32 %v665, %v714
      %v746 = vmul.f32 %v666, %v714
      %v747 = vmul.f32 %v667, %v714
      %v748 = vmul.f32 %v668, %v714
      %v749 = vmul.f32 %v669, %v719
      %v750 = vmul.f32 %v670, %v719
      %v751 = vmul.f32 %v671, %v719
      %v752 = vmul.f32 %v672, %v719
      %v753 = vld [vmem:[%s5 + $0x40] sm:$0xff]
      %v754 = vld [vmem:[%s5 + $0x48] sm:$0xff]
      %v755 = vld [vmem:[%s5 + $0x50] sm:$0xff]
      %v756 = vld [vmem:[%s5 + $0x58] sm:$0xff]
      %v757 = vld [vmem:[%s5 + $0x60] sm:$0xff]
      %v758 = vld [vmem:[%s5 + $0x68] sm:$0xff]
      %v759 = vld [vmem:[%s5 + $0x70] sm:$0xff]
      %v760 = vld [vmem:[%s5 + $0x78] sm:$0xff]
      %762 = vset.pattern.permute.xlu0 0
      %763 = vperm.xlu0 %762, %v753
      %v764 = vpop.permute.xlu0 %763
      %767 = vset.pattern.permute.xlu0 0
      %768 = vperm.xlu0 %767, %v754
      %v769 = vpop.permute.xlu0 %768
      %772 = vset.pattern.permute.xlu0 0
      %773 = vperm.xlu0 %772, %v755
      %v774 = vpop.permute.xlu0 %773
      %777 = vset.pattern.permute.xlu0 0
      %778 = vperm.xlu0 %777, %v756
      %v779 = vpop.permute.xlu0 %778
      %782 = vset.pattern.permute.xlu0 0
      %783 = vperm.xlu0 %782, %v757
      %v784 = vpop.permute.xlu0 %783
      %787 = vset.pattern.permute.xlu0 0
      %788 = vperm.xlu0 %787, %v758
      %v789 = vpop.permute.xlu0 %788
      %792 = vset.pattern.permute.xlu0 0
      %793 = vperm.xlu0 %792, %v759
      %v794 = vpop.permute.xlu0 %793
      %797 = vset.pattern.permute.xlu0 0
      %798 = vperm.xlu0 %797, %v760
      %v799 = vpop.permute.xlu0 %798
      %v801 = vadd.f32 %v721, %v764
      %v802 = vadd.f32 %v722, %v764
      %v803 = vadd.f32 %v723, %v764
      %v804 = vadd.f32 %v724, %v764
      %v805 = vadd.f32 %v725, %v769
      %v806 = vadd.f32 %v726, %v769
      %v807 = vadd.f32 %v727, %v769
      %v808 = vadd.f32 %v728, %v769
      %v809 = vadd.f32 %v729, %v774
      %v810 = vadd.f32 %v730, %v774
      %v811 = vadd.f32 %v731, %v774
      %v812 = vadd.f32 %v732, %v774
      %v813 = vadd.f32 %v733, %v779
      %v814 = vadd.f32 %v734, %v779
      %v815 = vadd.f32 %v735, %v779
      %v816 = vadd.f32 %v736, %v779
      %v817 = vadd.f32 %v737, %v784
      %v818 = vadd.f32 %v738, %v784
      %v819 = vadd.f32 %v739, %v784
      %v820 = vadd.f32 %v740, %v784
      %v821 = vadd.f32 %v741, %v789
      %v822 = vadd.f32 %v742, %v789
      %v823 = vadd.f32 %v743, %v789
      %v824 = vadd.f32 %v744, %v789
      %v825 = vadd.f32 %v745, %v794
      %v826 = vadd.f32 %v746, %v794
      %v827 = vadd.f32 %v747, %v794
      %v828 = vadd.f32 %v748, %v794
      %v829 = vadd.f32 %v749, %v799
      %v830 = vadd.f32 %v750, %v799
      %v831 = vadd.f32 %v751, %v799
      %v832 = vadd.f32 %v752, %v799
      %v833 = vmax.f32 %v801, 0.0
      %v834 = vmax.f32 %v802, 0.0
      %v835 = vmax.f32 %v803, 0.0
      %v836 = vmax.f32 %v804, 0.0
      %v837 = vmax.f32 %v805, 0.0
      %v838 = vmax.f32 %v806, 0.0
      %v839 = vmax.f32 %v807, 0.0
      %v840 = vmax.f32 %v808, 0.0
      %v841 = vmax.f32 %v809, 0.0
      %v842 = vmax.f32 %v810, 0.0
      %v843 = vmax.f32 %v811, 0.0
      %v844 = vmax.f32 %v812, 0.0
      %v845 = vmax.f32 %v813, 0.0
      %v846 = vmax.f32 %v814, 0.0
      %v847 = vmax.f32 %v815, 0.0
      %v848 = vmax.f32 %v816, 0.0
      %v849 = vmax.f32 %v817, 0.0
      %v850 = vmax.f32 %v818, 0.0
      %v851 = vmax.f32 %v819, 0.0
      %v852 = vmax.f32 %v820, 0.0
      %v853 = vmax.f32 %v821, 0.0
      %v854 = vmax.f32 %v822, 0.0
      %v855 = vmax.f32 %v823, 0.0
      %v856 = vmax.f32 %v824, 0.0
      %v857 = vmax.f32 %v825, 0.0
      %v858 = vmax.f32 %v826, 0.0
      %v859 = vmax.f32 %v827, 0.0
      %v860 = vmax.f32 %v828, 0.0
      %v861 = vmax.f32 %v829, 0.0
      %v862 = vmax.f32 %v830, 0.0
      %v863 = vmax.f32 %v831, 0.0
      %v864 = vmax.f32 %v832, 0.0
      %v865 = vpack.c.bf16 %v834, %v833
      %v866 = vpack.c.bf16 %v836, %v835
      %v867 = vpack.c.bf16 %v838, %v837
      %v868 = vpack.c.bf16 %v840, %v839
      %v869 = vpack.c.bf16 %v842, %v841
      %v870 = vpack.c.bf16 %v844, %v843
      %v871 = vpack.c.bf16 %v846, %v845
      %v872 = vpack.c.bf16 %v848, %v847
      %v873 = vpack.c.bf16 %v850, %v849
      %v874 = vpack.c.bf16 %v852, %v851
      %v875 = vpack.c.bf16 %v854, %v853
      %v876 = vpack.c.bf16 %v856, %v855
      %v877 = vpack.c.bf16 %v858, %v857
      %v878 = vpack.c.bf16 %v860, %v859
      %v879 = vpack.c.bf16 %v862, %v861
      %v880 = vpack.c.bf16 %v864, %v863
      %881 = vst [vmem:[#allocation2] sm:$0xff] %v865
      %vm882 = vcmask 1043456
      %vm883 = vcmask 556036
      %vm884 = vmor %vm883, %vm882
      %885 = vst.msk [vmem:[#allocation2 + $0x8] sm:$0xff] %vm884, %v866
      %886 = vst [vmem:[#allocation2 + $0x10] sm:$0xff] %v867
      %887 = vst.msk [vmem:[#allocation2 + $0x18] sm:$0xff] %vm884, %v868
      %888 = vst [vmem:[#allocation2 + $0x20] sm:$0xff] %v869
      %889 = vst.msk [vmem:[#allocation2 + $0x28] sm:$0xff] %vm884, %v870
      %890 = vst [vmem:[#allocation2 + $0x30] sm:$0xff] %v871
      %891 = vst.msk [vmem:[#allocation2 + $0x38] sm:$0xff] %vm884, %v872
      %892 = vst [vmem:[#allocation2 + $0x40] sm:$0xff] %v873
      %893 = vst.msk [vmem:[#allocation2 + $0x48] sm:$0xff] %vm884, %v874
      %894 = vst [vmem:[#allocation2 + $0x50] sm:$0xff] %v875
      %895 = vst.msk [vmem:[#allocation2 + $0x58] sm:$0xff] %vm884, %v876
      %896 = vst [vmem:[#allocation2 + $0x60] sm:$0xff] %v877
      %897 = vst.msk [vmem:[#allocation2 + $0x68] sm:$0xff] %vm884, %v878
      %898 = vst [vmem:[#allocation2 + $0x70] sm:$0xff] %v879
      %899 = vst.msk [vmem:[#allocation2 + $0x78] sm:$0xff] %vm884, %v880
      %v900 = vld [vmem:[#allocation2] sm:$0xff]
      %v901 = vld [vmem:[#allocation2 + $0x10] sm:$0xff]
      %v902 = vld [vmem:[#allocation2 + $0x20] sm:$0xff]
      %v903 = vld [vmem:[#allocation2 + $0x30] sm:$0xff]
      %v904 = vld [vmem:[#allocation2 + $0x40] sm:$0xff]
      %v905 = vld [vmem:[#allocation2 + $0x50] sm:$0xff]
      %v906 = vld [vmem:[#allocation2 + $0x60] sm:$0xff]
      %v907 = vld [vmem:[#allocation2 + $0x70] sm:$0xff]
      %vm908 = vcmask 670724
      %vm909 = vmor %vm908, %vm882
      %910 = vst.msk [vmem:[#allocation3] sm:$0xff] %vm909, %v900
      %911 = vst.msk [vmem:[#allocation3 + $0x10] sm:$0xff] %vm909, %v901
      %912 = vst.msk [vmem:[#allocation3 + $0x20] sm:$0xff] %vm909, %v902
      %913 = vst.msk [vmem:[#allocation3 + $0x30] sm:$0xff] %vm909, %v903
      %914 = vst.msk [vmem:[#allocation3 + $0x40] sm:$0xff] %vm909, %v904
      %915 = vst.msk [vmem:[#allocation3 + $0x50] sm:$0xff] %vm909, %v905
      %916 = vst.msk [vmem:[#allocation3 + $0x60] sm:$0xff] %vm909, %v906
      %917 = vst.msk [vmem:[#allocation3 + $0x70] sm:$0xff] %vm909, %v907
      %v918 = vld [vmem:[#allocation2 + $0x4] sm:$0xff]
      %v919 = vld [vmem:[#allocation2 + $0xc] sm:$0xf]
      %v920 = vld [vmem:[#allocation2 + $0x14] sm:$0xff]
      %v921 = vld [vmem:[#allocation2 + $0x1c] sm:$0xf]
      %v922 = vld [vmem:[#allocation2 + $0x24] sm:$0xff]
      %v923 = vld [vmem:[#allocation2 + $0x2c] sm:$0xf]
      %v924 = vld [vmem:[#allocation2 + $0x34] sm:$0xff]
      %v925 = vld [vmem:[#allocation2 + $0x3c] sm:$0xf]
      %v926 = vld [vmem:[#allocation2 + $0x44] sm:$0xff]
      %v927 = vld [vmem:[#allocation2 + $0x4c] sm:$0xf]
      %v928 = vld [vmem:[#allocation2 + $0x54] sm:$0xff]
      %v929 = vld [vmem:[#allocation2 + $0x5c] sm:$0xf]
      %v930 = vld [vmem:[#allocation2 + $0x64] sm:$0xff]
      %v931 = vld [vmem:[#allocation2 + $0x6c] sm:$0xf]
      %v932 = vld [vmem:[#allocation2 + $0x74] sm:$0xff]
      %v933 = vld [vmem:[#allocation2 + $0x7c] sm:$0xf]
      %950 = vrot.lane.b32.xlu0 %v918, 112
      %v951 = vpop.permute.xlu0 %950
      %952 = vrot.lane.b32.xlu0 %v919, 112
      %v953 = vpop.permute.xlu0 %952
      %954 = vrot.lane.b32.xlu0 %v920, 112
      %v955 = vpop.permute.xlu0 %954
      %956 = vrot.lane.b32.xlu0 %v921, 112
      %v957 = vpop.permute.xlu0 %956
      %958 = vrot.lane.b32.xlu0 %v922, 112
      %v959 = vpop.permute.xlu0 %958
      %960 = vrot.lane.b32.xlu0 %v923, 112
      %v961 = vpop.permute.xlu0 %960
      %962 = vrot.lane.b32.xlu0 %v924, 112
      %v963 = vpop.permute.xlu0 %962
      %964 = vrot.lane.b32.xlu0 %v925, 112
      %v965 = vpop.permute.xlu0 %964
      %966 = vrot.lane.b32.xlu0 %v926, 112
      %v967 = vpop.permute.xlu0 %966
      %968 = vrot.lane.b32.xlu0 %v927, 112
      %v969 = vpop.permute.xlu0 %968
      %970 = vrot.lane.b32.xlu0 %v928, 112
      %v971 = vpop.permute.xlu0 %970
      %972 = vrot.lane.b32.xlu0 %v929, 112
      %v973 = vpop.permute.xlu0 %972
      %974 = vrot.lane.b32.xlu0 %v930, 112
      %v975 = vpop.permute.xlu0 %974
      %976 = vrot.lane.b32.xlu0 %v931, 112
      %v977 = vpop.permute.xlu0 %976
      %978 = vrot.lane.b32.xlu0 %v932, 112
      %v979 = vpop.permute.xlu0 %978
      %980 = vrot.lane.b32.xlu0 %v933, 112
      %v981 = vpop.permute.xlu0 %980
      %v982 = vrot.slane %v951, 4
      %v983 = vrot.slane %v953, 4
      %v984 = vrot.slane %v955, 4
      %v985 = vrot.slane %v957, 4
      %v986 = vrot.slane %v959, 4
      %v987 = vrot.slane %v961, 4
      %v988 = vrot.slane %v963, 4
      %v989 = vrot.slane %v965, 4
      %v990 = vrot.slane %v967, 4
      %v991 = vrot.slane %v969, 4
      %v992 = vrot.slane %v971, 4
      %v993 = vrot.slane %v973, 4
      %v994 = vrot.slane %v975, 4
      %v995 = vrot.slane %v977, 4
      %v996 = vrot.slane %v979, 4
      %v997 = vrot.slane %v981, 4
      %vm998 = vcmask 1043456
      %v999 = vsel %vm998, %v982, %v983
      %vm1000 = vcmask 916480
      %v1001 = vsel %vm1000, %v951, %v999
      %v1002 = vsel %vm998, %v984, %v985
      %v1003 = vsel %vm1000, %v955, %v1002
      %v1004 = vsel %vm998, %v986, %v987
      %v1005 = vsel %vm1000, %v959, %v1004
      %v1006 = vsel %vm998, %v988, %v989
      %v1007 = vsel %vm1000, %v963, %v1006
      %v1008 = vsel %vm998, %v990, %v991
      %v1009 = vsel %vm1000, %v967, %v1008
      %v1010 = vsel %vm998, %v992, %v993
      %v1011 = vsel %vm1000, %v971, %v1010
      %v1012 = vsel %vm998, %v994, %v995
      %v1013 = vsel %vm1000, %v975, %v1012
      %v1014 = vsel %vm998, %v996, %v997
      %v1015 = vsel %vm1000, %v979, %v1014
      %vm1032 = vcmask 1044112
      %vm1033 = vcmask 1047556
      %vm1034 = vmor %vm1033, %vm1032
      %1035 = vst.msk [vmem:[#allocation3 + $0x4] sm:$0xff] %vm1034, %v1001
      %vm1036 = vcmask 289792
      %1037 = vst.msk [vmem:[#allocation3 + $0xc] sm:$0xf] %vm1036, %v953
      %1038 = vst.msk [vmem:[#allocation3 + $0x14] sm:$0xff] %vm1034, %v1003
      %1039 = vst.msk [vmem:[#allocation3 + $0x1c] sm:$0xf] %vm1036, %v957
      %1040 = vst.msk [vmem:[#allocation3 + $0x24] sm:$0xff] %vm1034, %v1005
      %1041 = vst.msk [vmem:[#allocation3 + $0x2c] sm:$0xf] %vm1036, %v961
      %1042 = vst.msk [vmem:[#allocation3 + $0x34] sm:$0xff] %vm1034, %v1007
      %1043 = vst.msk [vmem:[#allocation3 + $0x3c] sm:$0xf] %vm1036, %v965
      %1044 = vst.msk [vmem:[#allocation3 + $0x44] sm:$0xff] %vm1034, %v1009
      %1045 = vst.msk [vmem:[#allocation3 + $0x4c] sm:$0xf] %vm1036, %v969
      %1046 = vst.msk [vmem:[#allocation3 + $0x54] sm:$0xff] %vm1034, %v1011
      %1047 = vst.msk [vmem:[#allocation3 + $0x5c] sm:$0xf] %vm1036, %v973
      %1048 = vst.msk [vmem:[#allocation3 + $0x64] sm:$0xff] %vm1034, %v1013
      %1049 = vst.msk [vmem:[#allocation3 + $0x6c] sm:$0xf] %vm1036, %v977
      %1050 = vst.msk [vmem:[#allocation3 + $0x74] sm:$0xff] %vm1034, %v1015
      %1051 = vst.msk [vmem:[#allocation3 + $0x7c] sm:$0xf] %vm1036, %v981
      %v1052 = vld [vmem:[#allocation2] sm:$0xff]
      %v1053 = vld [vmem:[#allocation2 + $0x10] sm:$0xff]
      %v1054 = vld [vmem:[#allocation2 + $0x20] sm:$0xff]
      %v1055 = vld [vmem:[#allocation2 + $0x30] sm:$0xff]
      %v1056 = vld [vmem:[#allocation2 + $0x40] sm:$0xff]
      %v1057 = vld [vmem:[#allocation2 + $0x50] sm:$0xff]
      %v1058 = vld [vmem:[#allocation2 + $0x60] sm:$0xff]
      %v1059 = vld [vmem:[#allocation2 + $0x70] sm:$0xff]
      %1068 = vrot.lane.b32.xlu0 %v1052, 127
      %v1069 = vpop.permute.xlu0 %1068
      %1070 = vrot.lane.b32.xlu0 %v1053, 127
      %v1071 = vpop.permute.xlu0 %1070
      %1072 = vrot.lane.b32.xlu0 %v1054, 127
      %v1073 = vpop.permute.xlu0 %1072
      %1074 = vrot.lane.b32.xlu0 %v1055, 127
      %v1075 = vpop.permute.xlu0 %1074
      %1076 = vrot.lane.b32.xlu0 %v1056, 127
      %v1077 = vpop.permute.xlu0 %1076
      %1078 = vrot.lane.b32.xlu0 %v1057, 127
      %v1079 = vpop.permute.xlu0 %1078
      %1080 = vrot.lane.b32.xlu0 %v1058, 127
      %v1081 = vpop.permute.xlu0 %1080
      %1082 = vrot.lane.b32.xlu0 %v1059, 127
      %v1083 = vpop.permute.xlu0 %1082
      %v1084 = vrot.slane %v1069, 4
      %v1085 = vrot.slane %v1071, 4
      %v1086 = vrot.slane %v1073, 4
      %v1087 = vrot.slane %v1075, 4
      %v1088 = vrot.slane %v1077, 4
      %v1089 = vrot.slane %v1079, 4
      %v1090 = vrot.slane %v1081, 4
      %v1091 = vrot.slane %v1083, 4
      %vm1092 = vcmask 1039360
      %v1093 = vsel %vm1092, %v1069, %v1084
      %v1094 = vsel %vm1092, %v1071, %v1085
      %v1095 = vsel %vm1092, %v1073, %v1086
      %v1096 = vsel %vm1092, %v1075, %v1087
      %v1097 = vsel %vm1092, %v1077, %v1088
      %v1098 = vsel %vm1092, %v1079, %v1089
      %v1099 = vsel %vm1092, %v1081, %v1090
      %v1100 = vsel %vm1092, %v1083, %v1091
      %1109 = vst.msk [vmem:[#allocation3 + $0x80] sm:$0xff] %vm909, %v1093
      %1110 = vst.msk [vmem:[#allocation3 + $0x90] sm:$0xff] %vm909, %v1094
      %1111 = vst.msk [vmem:[#allocation3 + $0xa0] sm:$0xff] %vm909, %v1095
      %1112 = vst.msk [vmem:[#allocation3 + $0xb0] sm:$0xff] %vm909, %v1096
      %1113 = vst.msk [vmem:[#allocation3 + $0xc0] sm:$0xff] %vm909, %v1097
      %1114 = vst.msk [vmem:[#allocation3 + $0xd0] sm:$0xff] %vm909, %v1098
      %1115 = vst.msk [vmem:[#allocation3 + $0xe0] sm:$0xff] %vm909, %v1099
      %1116 = vst.msk [vmem:[#allocation3 + $0xf0] sm:$0xff] %vm909, %v1100
      %v1117 = vld [vmem:[#allocation2 + $0x4] sm:$0xff]
      %v1118 = vld [vmem:[#allocation2 + $0xc] sm:$0xf]
      %v1119 = vld [vmem:[#allocation2 + $0x14] sm:$0xff]
      %v1120 = vld [vmem:[#allocation2 + $0x1c] sm:$0xf]
      %v1121 = vld [vmem:[#allocation2 + $0x24] sm:$0xff]
      %v1122 = vld [vmem:[#allocation2 + $0x2c] sm:$0xf]
      %v1123 = vld [vmem:[#allocation2 + $0x34] sm:$0xff]
      %v1124 = vld [vmem:[#allocation2 + $0x3c] sm:$0xf]
      %v1125 = vld [vmem:[#allocation2 + $0x44] sm:$0xff]
      %v1126 = vld [vmem:[#allocation2 + $0x4c] sm:$0xf]
      %v1127 = vld [vmem:[#allocation2 + $0x54] sm:$0xff]
      %v1128 = vld [vmem:[#allocation2 + $0x5c] sm:$0xf]
      %v1129 = vld [vmem:[#allocation2 + $0x64] sm:$0xff]
      %v1130 = vld [vmem:[#allocation2 + $0x6c] sm:$0xf]
      %v1131 = vld [vmem:[#allocation2 + $0x74] sm:$0xff]
      %v1132 = vld [vmem:[#allocation2 + $0x7c] sm:$0xf]
      %1149 = vrot.lane.b32.xlu0 %v1117, 111
      %v1150 = vpop.permute.xlu0 %1149
      %1151 = vrot.lane.b32.xlu0 %v1118, 111
      %v1152 = vpop.permute.xlu0 %1151
      %1153 = vrot.lane.b32.xlu0 %v1119, 111
      %v1154 = vpop.permute.xlu0 %1153
      %1155 = vrot.lane.b32.xlu0 %v1120, 111
      %v1156 = vpop.permute.xlu0 %1155
      %1157 = vrot.lane.b32.xlu0 %v1121, 111
      %v1158 = vpop.permute.xlu0 %1157
      %1159 = vrot.lane.b32.xlu0 %v1122, 111
      %v1160 = vpop.permute.xlu0 %1159
      %1161 = vrot.lane.b32.xlu0 %v1123, 111
      %v1162 = vpop.permute.xlu0 %1161
      %1163 = vrot.lane.b32.xlu0 %v1124, 111
      %v1164 = vpop.permute.xlu0 %1163
      %1165 = vrot.lane.b32.xlu0 %v1125, 111
      %v1166 = vpop.permute.xlu0 %1165
      %1167 = vrot.lane.b32.xlu0 %v1126, 111
      %v1168 = vpop.permute.xlu0 %1167
      %1169 = vrot.lane.b32.xlu0 %v1127, 111
      %v1170 = vpop.permute.xlu0 %1169
      %1171 = vrot.lane.b32.xlu0 %v1128, 111
      %v1172 = vpop.permute.xlu0 %1171
      %1173 = vrot.lane.b32.xlu0 %v1129, 111
      %v1174 = vpop.permute.xlu0 %1173
      %1175 = vrot.lane.b32.xlu0 %v1130, 111
      %v1176 = vpop.permute.xlu0 %1175
      %1177 = vrot.lane.b32.xlu0 %v1131, 111
      %v1178 = vpop.permute.xlu0 %1177
      %1179 = vrot.lane.b32.xlu0 %v1132, 111
      %v1180 = vpop.permute.xlu0 %1179
      %v1181 = vrot.slane %v1150, 4
      %v1182 = vrot.slane %v1152, 4
      %v1183 = vrot.slane %v1154, 4
      %v1184 = vrot.slane %v1156, 4
      %v1185 = vrot.slane %v1158, 4
      %v1186 = vrot.slane %v1160, 4
      %v1187 = vrot.slane %v1162, 4
      %v1188 = vrot.slane %v1164, 4
      %v1189 = vrot.slane %v1166, 4
      %v1190 = vrot.slane %v1168, 4
      %v1191 = vrot.slane %v1170, 4
      %v1192 = vrot.slane %v1172, 4
      %v1193 = vrot.slane %v1174, 4
      %v1194 = vrot.slane %v1176, 4
      %v1195 = vrot.slane %v1178, 4
      %v1196 = vrot.slane %v1180, 4
      %v1197 = vsel %vm998, %v1181, %v1182
      %vm1198 = vcmask 908288
      %v1199 = vsel %vm1198, %v1150, %v1197
      %v1200 = vsel %vm998, %v1183, %v1184
      %v1201 = vsel %vm1198, %v1154, %v1200
      %v1202 = vsel %vm998, %v1185, %v1186
      %v1203 = vsel %vm1198, %v1158, %v1202
      %v1204 = vsel %vm998, %v1187, %v1188
      %v1205 = vsel %vm1198, %v1162, %v1204
      %v1206 = vsel %vm998, %v1189, %v1190
      %v1207 = vsel %vm1198, %v1166, %v1206
      %v1208 = vsel %vm998, %v1191, %v1192
      %v1209 = vsel %vm1198, %v1170, %v1208
      %v1210 = vsel %vm998, %v1193, %v1194
      %v1211 = vsel %vm1198, %v1174, %v1210
      %v1212 = vsel %vm998, %v1195, %v1196
      %v1213 = vsel %vm1198, %v1178, %v1212
      %1230 = vst.msk [vmem:[#allocation3 + $0x84] sm:$0xff] %vm1034, %v1199
      %1231 = vst.msk [vmem:[#allocation3 + $0x8c] sm:$0xf] %vm1036, %v1152
      %1232 = vst.msk [vmem:[#allocation3 + $0x94] sm:$0xff] %vm1034, %v1201
      %1233 = vst.msk [vmem:[#allocation3 + $0x9c] sm:$0xf] %vm1036, %v1156
      %1234 = vst.msk [vmem:[#allocation3 + $0xa4] sm:$0xff] %vm1034, %v1203
      %1235 = vst.msk [vmem:[#allocation3 + $0xac] sm:$0xf] %vm1036, %v1160
      %1236 = vst.msk [vmem:[#allocation3 + $0xb4] sm:$0xff] %vm1034, %v1205
      %1237 = vst.msk [vmem:[#allocation3 + $0xbc] sm:$0xf] %vm1036, %v1164
      %1238 = vst.msk [vmem:[#allocation3 + $0xc4] sm:$0xff] %vm1034, %v1207
      %1239 = vst.msk [vmem:[#allocation3 + $0xcc] sm:$0xf] %vm1036, %v1168
      %1240 = vst.msk [vmem:[#allocation3 + $0xd4] sm:$0xff] %vm1034, %v1209
      %1241 = vst.msk [vmem:[#allocation3 + $0xdc] sm:$0xf] %vm1036, %v1172
      %1242 = vst.msk [vmem:[#allocation3 + $0xe4] sm:$0xff] %vm1034, %v1211
      %1243 = vst.msk [vmem:[#allocation3 + $0xec] sm:$0xf] %vm1036, %v1176
      %1244 = vst.msk [vmem:[#allocation3 + $0xf4] sm:$0xff] %vm1034, %v1213
      %1245 = vst.msk [vmem:[#allocation3 + $0xfc] sm:$0xf] %vm1036, %v1180
      %v1246 = vld [vmem:[#allocation2] sm:$0xff]
      %v1247 = vld [vmem:[#allocation2 + $0x10] sm:$0xff]
      %v1248 = vld [vmem:[#allocation2 + $0x20] sm:$0xff]
      %v1249 = vld [vmem:[#allocation2 + $0x30] sm:$0xff]
      %v1250 = vld [vmem:[#allocation2 + $0x40] sm:$0xff]
      %v1251 = vld [vmem:[#allocation2 + $0x50] sm:$0xff]
      %v1252 = vld [vmem:[#allocation2 + $0x60] sm:$0xff]
      %v1253 = vld [vmem:[#allocation2 + $0x70] sm:$0xff]
      %1262 = vrot.lane.b32.xlu0 %v1246, 113
      %v1263 = vpop.permute.xlu0 %1262
      %1264 = vrot.lane.b32.xlu0 %v1247, 113
      %v1265 = vpop.permute.xlu0 %1264
      %1266 = vrot.lane.b32.xlu0 %v1248, 113
      %v1267 = vpop.permute.xlu0 %1266
      %1268 = vrot.lane.b32.xlu0 %v1249, 113
      %v1269 = vpop.permute.xlu0 %1268
      %1270 = vrot.lane.b32.xlu0 %v1250, 113
      %v1271 = vpop.permute.xlu0 %1270
      %1272 = vrot.lane.b32.xlu0 %v1251, 113
      %v1273 = vpop.permute.xlu0 %1272
      %1274 = vrot.lane.b32.xlu0 %v1252, 113
      %v1275 = vpop.permute.xlu0 %1274
      %1276 = vrot.lane.b32.xlu0 %v1253, 113
      %v1277 = vpop.permute.xlu0 %1276
      %v1278 = vrot.slane %v1263, 4
      %v1279 = vrot.slane %v1265, 4
      %v1280 = vrot.slane %v1267, 4
      %v1281 = vrot.slane %v1269, 4
      %v1282 = vrot.slane %v1271, 4
      %v1283 = vrot.slane %v1273, 4
      %v1284 = vrot.slane %v1275, 4
      %v1285 = vrot.slane %v1277, 4
      %vm1286 = vcmask 924672
      %v1287 = vsel %vm1286, %v1263, %v1278
      %v1288 = vsel %vm1286, %v1265, %v1279
      %v1289 = vsel %vm1286, %v1267, %v1280
      %v1290 = vsel %vm1286, %v1269, %v1281
      %v1291 = vsel %vm1286, %v1271, %v1282
      %v1292 = vsel %vm1286, %v1273, %v1283
      %v1293 = vsel %vm1286, %v1275, %v1284
      %v1294 = vsel %vm1286, %v1277, %v1285
      %1303 = vst.msk [vmem:[#allocation3 + $0x100] sm:$0xff] %vm909, %v1287
      %1304 = vst.msk [vmem:[#allocation3 + $0x110] sm:$0xff] %vm909, %v1288
      %1305 = vst.msk [vmem:[#allocation3 + $0x120] sm:$0xff] %vm909, %v1289
      %1306 = vst.msk [vmem:[#allocation3 + $0x130] sm:$0xff] %vm909, %v1290
      %1307 = vst.msk [vmem:[#allocation3 + $0x140] sm:$0xff] %vm909, %v1291
      %1308 = vst.msk [vmem:[#allocation3 + $0x150] sm:$0xff] %vm909, %v1292
      %1309 = vst.msk [vmem:[#allocation3 + $0x160] sm:$0xff] %vm909, %v1293
      %1310 = vst.msk [vmem:[#allocation3 + $0x170] sm:$0xff] %vm909, %v1294
      %v1311 = vld [vmem:[#allocation2 + $0x4] sm:$0xff]
      %v1312 = vld [vmem:[#allocation2 + $0xc] sm:$0xf]
      %v1313 = vld [vmem:[#allocation2 + $0x14] sm:$0xff]
      %v1314 = vld [vmem:[#allocation2 + $0x1c] sm:$0xf]
      %v1315 = vld [vmem:[#allocation2 + $0x24] sm:$0xff]
      %v1316 = vld [vmem:[#allocation2 + $0x2c] sm:$0xf]
      %v1317 = vld [vmem:[#allocation2 + $0x34] sm:$0xff]
      %v1318 = vld [vmem:[#allocation2 + $0x3c] sm:$0xf]
      %v1319 = vld [vmem:[#allocation2 + $0x44] sm:$0xff]
      %v1320 = vld [vmem:[#allocation2 + $0x4c] sm:$0xf]
      %v1321 = vld [vmem:[#allocation2 + $0x54] sm:$0xff]
      %v1322 = vld [vmem:[#allocation2 + $0x5c] sm:$0xf]
      %v1323 = vld [vmem:[#allocation2 + $0x64] sm:$0xff]
      %v1324 = vld [vmem:[#allocation2 + $0x6c] sm:$0xf]
      %v1325 = vld [vmem:[#allocation2 + $0x74] sm:$0xff]
      %v1326 = vld [vmem:[#allocation2 + $0x7c] sm:$0xf]
      %1343 = vrot.lane.b32.xlu0 %v1311, 97
      %v1344 = vpop.permute.xlu0 %1343
      %1345 = vrot.lane.b32.xlu0 %v1312, 97
      %v1346 = vpop.permute.xlu0 %1345
      %1347 = vrot.lane.b32.xlu0 %v1313, 97
      %v1348 = vpop.permute.xlu0 %1347
      %1349 = vrot.lane.b32.xlu0 %v1314, 97
      %v1350 = vpop.permute.xlu0 %1349
      %1351 = vrot.lane.b32.xlu0 %v1315, 97
      %v1352 = vpop.permute.xlu0 %1351
      %1353 = vrot.lane.b32.xlu0 %v1316, 97
      %v1354 = vpop.permute.xlu0 %1353
      %1355 = vrot.lane.b32.xlu0 %v1317, 97
      %v1356 = vpop.permute.xlu0 %1355
      %1357 = vrot.lane.b32.xlu0 %v1318, 97
      %v1358 = vpop.permute.xlu0 %1357
      %1359 = vrot.lane.b32.xlu0 %v1319, 97
      %v1360 = vpop.permute.xlu0 %1359
      %1361 = vrot.lane.b32.xlu0 %v1320, 97
      %v1362 = vpop.permute.xlu0 %1361
      %1363 = vrot.lane.b32.xlu0 %v1321, 97
      %v1364 = vpop.permute.xlu0 %1363
      %1365 = vrot.lane.b32.xlu0 %v1322, 97
      %v1366 = vpop.permute.xlu0 %1365
      %1367 = vrot.lane.b32.xlu0 %v1323, 97
      %v1368 = vpop.permute.xlu0 %1367
      %1369 = vrot.lane.b32.xlu0 %v1324, 97
      %v1370 = vpop.permute.xlu0 %1369
      %1371 = vrot.lane.b32.xlu0 %v1325, 97
      %v1372 = vpop.permute.xlu0 %1371
      %1373 = vrot.lane.b32.xlu0 %v1326, 97
      %v1374 = vpop.permute.xlu0 %1373
      %v1375 = vrot.slane %v1344, 4
      %v1376 = vrot.slane %v1346, 4
      %v1377 = vrot.slane %v1348, 4
      %v1378 = vrot.slane %v1350, 4
      %v1379 = vrot.slane %v1352, 4
      %v1380 = vrot.slane %v1354, 4
      %v1381 = vrot.slane %v1356, 4
      %v1382 = vrot.slane %v1358, 4
      %v1383 = vrot.slane %v1360, 4
      %v1384 = vrot.slane %v1362, 4
      %v1385 = vrot.slane %v1364, 4
      %v1386 = vrot.slane %v1366, 4
      %v1387 = vrot.slane %v1368, 4
      %v1388 = vrot.slane %v1370, 4
      %v1389 = vrot.slane %v1372, 4
      %v1390 = vrot.slane %v1374, 4
      %v1391 = vsel %vm998, %v1375, %v1376
      %vm1392 = vcmask 793600
      %v1393 = vsel %vm1392, %v1344, %v1391
      %v1394 = vsel %vm998, %v1377, %v1378
      %v1395 = vsel %vm1392, %v1348, %v1394
      %v1396 = vsel %vm998, %v1379, %v1380
      %v1397 = vsel %vm1392, %v1352, %v1396
      %v1398 = vsel %vm998, %v1381, %v1382
      %v1399 = vsel %vm1392, %v1356, %v1398
      %v1400 = vsel %vm998, %v1383, %v1384
      %v1401 = vsel %vm1392, %v1360, %v1400
      %v1402 = vsel %vm998, %v1385, %v1386
      %v1403 = vsel %vm1392, %v1364, %v1402
      %v1404 = vsel %vm998, %v1387, %v1388
      %v1405 = vsel %vm1392, %v1368, %v1404
      %v1406 = vsel %vm998, %v1389, %v1390
      %v1407 = vsel %vm1392, %v1372, %v1406
      %1424 = vst.msk [vmem:[#allocation3 + $0x104] sm:$0xff] %vm1034, %v1393
      %1425 = vst.msk [vmem:[#allocation3 + $0x10c] sm:$0xf] %vm1036, %v1346
      %1426 = vst.msk [vmem:[#allocation3 + $0x114] sm:$0xff] %vm1034, %v1395
      %1427 = vst.msk [vmem:[#allocation3 + $0x11c] sm:$0xf] %vm1036, %v1350
      %1428 = vst.msk [vmem:[#allocation3 + $0x124] sm:$0xff] %vm1034, %v1397
      %1429 = vst.msk [vmem:[#allocation3 + $0x12c] sm:$0xf] %vm1036, %v1354
      %1430 = vst.msk [vmem:[#allocation3 + $0x134] sm:$0xff] %vm1034, %v1399
      %1431 = vst.msk [vmem:[#allocation3 + $0x13c] sm:$0xf] %vm1036, %v1358
      %1432 = vst.msk [vmem:[#allocation3 + $0x144] sm:$0xff] %vm1034, %v1401
      %1433 = vst.msk [vmem:[#allocation3 + $0x14c] sm:$0xf] %vm1036, %v1362
      %1434 = vst.msk [vmem:[#allocation3 + $0x154] sm:$0xff] %vm1034, %v1403
      %1435 = vst.msk [vmem:[#allocation3 + $0x15c] sm:$0xf] %vm1036, %v1366
      %1436 = vst.msk [vmem:[#allocation3 + $0x164] sm:$0xff] %vm1034, %v1405
      %1437 = vst.msk [vmem:[#allocation3 + $0x16c] sm:$0xf] %vm1036, %v1370
      %1438 = vst.msk [vmem:[#allocation3 + $0x174] sm:$0xff] %vm1034, %v1407
      %1439 = vst.msk [vmem:[#allocation3 + $0x17c] sm:$0xf] %vm1036, %v1374
      %v1440 = vld [vmem:[#allocation2] sm:$0xff]
      %v1441 = vld [vmem:[#allocation2 + $0x10] sm:$0xff]
      %v1442 = vld [vmem:[#allocation2 + $0x20] sm:$0xff]
      %v1443 = vld [vmem:[#allocation2 + $0x30] sm:$0xff]
      %v1444 = vld [vmem:[#allocation2 + $0x40] sm:$0xff]
      %v1445 = vld [vmem:[#allocation2 + $0x50] sm:$0xff]
      %v1446 = vld [vmem:[#allocation2 + $0x60] sm:$0xff]
      %v1447 = vld [vmem:[#allocation2 + $0x70] sm:$0xff]
      %1456 = vrot.lane.b32.xlu0 %v1440, 112
      %v1457 = vpop.permute.xlu0 %1456
      %1458 = vrot.lane.b32.xlu0 %v1441, 112
      %v1459 = vpop.permute.xlu0 %1458
      %1460 = vrot.lane.b32.xlu0 %v1442, 112
      %v1461 = vpop.permute.xlu0 %1460
      %1462 = vrot.lane.b32.xlu0 %v1443, 112
      %v1463 = vpop.permute.xlu0 %1462
      %1464 = vrot.lane.b32.xlu0 %v1444, 112
      %v1465 = vpop.permute.xlu0 %1464
      %1466 = vrot.lane.b32.xlu0 %v1445, 112
      %v1467 = vpop.permute.xlu0 %1466
      %1468 = vrot.lane.b32.xlu0 %v1446, 112
      %v1469 = vpop.permute.xlu0 %1468
      %1470 = vrot.lane.b32.xlu0 %v1447, 112
      %v1471 = vpop.permute.xlu0 %1470
      %v1472 = vrot.slane %v1457, 4
      %v1473 = vrot.slane %v1459, 4
      %v1474 = vrot.slane %v1461, 4
      %v1475 = vrot.slane %v1463, 4
      %v1476 = vrot.slane %v1465, 4
      %v1477 = vrot.slane %v1467, 4
      %v1478 = vrot.slane %v1469, 4
      %v1479 = vrot.slane %v1471, 4
      %v1480 = vsel %vm1000, %v1457, %v1472
      %v1481 = vsel %vm1000, %v1459, %v1473
      %v1482 = vsel %vm1000, %v1461, %v1474
      %v1483 = vsel %vm1000, %v1463, %v1475
      %v1484 = vsel %vm1000, %v1465, %v1476
      %v1485 = vsel %vm1000, %v1467, %v1477
      %v1486 = vsel %vm1000, %v1469, %v1478
      %v1487 = vsel %vm1000, %v1471, %v1479
      %1496 = vst.msk [vmem:[#allocation3 + $0x180] sm:$0xff] %vm909, %v1480
      %1497 = vst.msk [vmem:[#allocation3 + $0x190] sm:$0xff] %vm909, %v1481
      %1498 = vst.msk [vmem:[#allocation3 + $0x1a0] sm:$0xff] %vm909, %v1482
      %1499 = vst.msk [vmem:[#allocation3 + $0x1b0] sm:$0xff] %vm909, %v1483
      %1500 = vst.msk [vmem:[#allocation3 + $0x1c0] sm:$0xff] %vm909, %v1484
      %1501 = vst.msk [vmem:[#allocation3 + $0x1d0] sm:$0xff] %vm909, %v1485
      %1502 = vst.msk [vmem:[#allocation3 + $0x1e0] sm:$0xff] %vm909, %v1486
      %1503 = vst.msk [vmem:[#allocation3 + $0x1f0] sm:$0xff] %vm909, %v1487
      %v1504 = vld [vmem:[#allocation2 + $0x4] sm:$0xff]
      %v1505 = vld [vmem:[#allocation2 + $0xc] sm:$0xf]
      %v1506 = vld [vmem:[#allocation2 + $0x14] sm:$0xff]
      %v1507 = vld [vmem:[#allocation2 + $0x1c] sm:$0xf]
      %v1508 = vld [vmem:[#allocation2 + $0x24] sm:$0xff]
      %v1509 = vld [vmem:[#allocation2 + $0x2c] sm:$0xf]
      %v1510 = vld [vmem:[#allocation2 + $0x34] sm:$0xff]
      %v1511 = vld [vmem:[#allocation2 + $0x3c] sm:$0xf]
      %v1512 = vld [vmem:[#allocation2 + $0x44] sm:$0xff]
      %v1513 = vld [vmem:[#allocation2 + $0x4c] sm:$0xf]
      %v1514 = vld [vmem:[#allocation2 + $0x54] sm:$0xff]
      %v1515 = vld [vmem:[#allocation2 + $0x5c] sm:$0xf]
      %v1516 = vld [vmem:[#allocation2 + $0x64] sm:$0xff]
      %v1517 = vld [vmem:[#allocation2 + $0x6c] sm:$0xf]
      %v1518 = vld [vmem:[#allocation2 + $0x74] sm:$0xff]
      %v1519 = vld [vmem:[#allocation2 + $0x7c] sm:$0xf]
      %1536 = vrot.lane.b32.xlu0 %v1504, 96
      %v1537 = vpop.permute.xlu0 %1536
      %1538 = vrot.lane.b32.xlu0 %v1505, 96
      %v1539 = vpop.permute.xlu0 %1538
      %1540 = vrot.lane.b32.xlu0 %v1506, 96
      %v1541 = vpop.permute.xlu0 %1540
      %1542 = vrot.lane.b32.xlu0 %v1507, 96
      %v1543 = vpop.permute.xlu0 %1542
      %1544 = vrot.lane.b32.xlu0 %v1508, 96
      %v1545 = vpop.permute.xlu0 %1544
      %1546 = vrot.lane.b32.xlu0 %v1509, 96
      %v1547 = vpop.permute.xlu0 %1546
      %1548 = vrot.lane.b32.xlu0 %v1510, 96
      %v1549 = vpop.permute.xlu0 %1548
      %1550 = vrot.lane.b32.xlu0 %v1511, 96
      %v1551 = vpop.permute.xlu0 %1550
      %1552 = vrot.lane.b32.xlu0 %v1512, 96
      %v1553 = vpop.permute.xlu0 %1552
      %1554 = vrot.lane.b32.xlu0 %v1513, 96
      %v1555 = vpop.permute.xlu0 %1554
      %1556 = vrot.lane.b32.xlu0 %v1514, 96
      %v1557 = vpop.permute.xlu0 %1556
      %1558 = vrot.lane.b32.xlu0 %v1515, 96
      %v1559 = vpop.permute.xlu0 %1558
      %1560 = vrot.lane.b32.xlu0 %v1516, 96
      %v1561 = vpop.permute.xlu0 %1560
      %1562 = vrot.lane.b32.xlu0 %v1517, 96
      %v1563 = vpop.permute.xlu0 %1562
      %1564 = vrot.lane.b32.xlu0 %v1518, 96
      %v1565 = vpop.permute.xlu0 %1564
      %1566 = vrot.lane.b32.xlu0 %v1519, 96
      %v1567 = vpop.permute.xlu0 %1566
      %v1568 = vrot.slane %v1537, 4
      %v1569 = vrot.slane %v1539, 4
      %v1570 = vrot.slane %v1541, 4
      %v1571 = vrot.slane %v1543, 4
      %v1572 = vrot.slane %v1545, 4
      %v1573 = vrot.slane %v1547, 4
      %v1574 = vrot.slane %v1549, 4
      %v1575 = vrot.slane %v1551, 4
      %v1576 = vrot.slane %v1553, 4
      %v1577 = vrot.slane %v1555, 4
      %v1578 = vrot.slane %v1557, 4
      %v1579 = vrot.slane %v1559, 4
      %v1580 = vrot.slane %v1561, 4
      %v1581 = vrot.slane %v1563, 4
      %v1582 = vrot.slane %v1565, 4
      %v1583 = vrot.slane %v1567, 4
      %v1584 = vsel %vm998, %v1568, %v1569
      %vm1585 = vcmask 785408
      %v1586 = vsel %vm1585, %v1537, %v1584
      %v1587 = vsel %vm998, %v1570, %v1571
      %v1588 = vsel %vm1585, %v1541, %v1587
      %v1589 = vsel %vm998, %v1572, %v1573
      %v1590 = vsel %vm1585, %v1545, %v1589
      %v1591 = vsel %vm998, %v1574, %v1575
      %v1592 = vsel %vm1585, %v1549, %v1591
      %v1593 = vsel %vm998, %v1576, %v1577
      %v1594 = vsel %vm1585, %v1553, %v1593
      %v1595 = vsel %vm998, %v1578, %v1579
      %v1596 = vsel %vm1585, %v1557, %v1595
      %v1597 = vsel %vm998, %v1580, %v1581
      %v1598 = vsel %vm1585, %v1561, %v1597
      %v1599 = vsel %vm998, %v1582, %v1583
      %v1600 = vsel %vm1585, %v1565, %v1599
      %1617 = vst.msk [vmem:[#allocation3 + $0x184] sm:$0xff] %vm1034, %v1586
      %1618 = vst.msk [vmem:[#allocation3 + $0x18c] sm:$0xf] %vm1036, %v1539
      %1619 = vst.msk [vmem:[#allocation3 + $0x194] sm:$0xff] %vm1034, %v1588
      %1620 = vst.msk [vmem:[#allocation3 + $0x19c] sm:$0xf] %vm1036, %v1543
      %1621 = vst.msk [vmem:[#allocation3 + $0x1a4] sm:$0xff] %vm1034, %v1590
      %1622 = vst.msk [vmem:[#allocation3 + $0x1ac] sm:$0xf] %vm1036, %v1547
      %1623 = vst.msk [vmem:[#allocation3 + $0x1b4] sm:$0xff] %vm1034, %v1592
      %1624 = vst.msk [vmem:[#allocation3 + $0x1bc] sm:$0xf] %vm1036, %v1551
      %1625 = vst.msk [vmem:[#allocation3 + $0x1c4] sm:$0xff] %vm1034, %v1594
      %1626 = vst.msk [vmem:[#allocation3 + $0x1cc] sm:$0xf] %vm1036, %v1555
      %1627 = vst.msk [vmem:[#allocation3 + $0x1d4] sm:$0xff] %vm1034, %v1596
      %1628 = vst.msk [vmem:[#allocation3 + $0x1dc] sm:$0xf] %vm1036, %v1559
      %1629 = vst.msk [vmem:[#allocation3 + $0x1e4] sm:$0xff] %vm1034, %v1598
      %1630 = vst.msk [vmem:[#allocation3 + $0x1ec] sm:$0xf] %vm1036, %v1563
      %1631 = vst.msk [vmem:[#allocation3 + $0x1f4] sm:$0xff] %vm1034, %v1600
      %1632 = vst.msk [vmem:[#allocation3 + $0x1fc] sm:$0xf] %vm1036, %v1567
      %v1633 = vld [vmem:[%s2] sm:$0xff]
      %v1634 = vld [vmem:[%s2 + $0x8] sm:$0xff]
      %v1635 = vld [vmem:[%s2 + $0x10] sm:$0xff]
      %v1636 = vld [vmem:[%s2 + $0x18] sm:$0xff]
      %v1637 = vld [vmem:[%s2 + $0x20] sm:$0xff]
      %v1638 = vld [vmem:[%s2 + $0x28] sm:$0xff]
      %v1639 = vld [vmem:[%s2 + $0x30] sm:$0xff]
      %v1640 = vld [vmem:[%s2 + $0x38] sm:$0xff]
      %v1641 = vld [vmem:[#allocation3] sm:$0xff]
      %v1642 = vld [vmem:[#allocation3 + $0x8] sm:$0xff]
      %v1643 = vld [vmem:[#allocation3 + $0x10] sm:$0xff]
      %v1644 = vld [vmem:[#allocation3 + $0x18] sm:$0xff]
      %v1645 = vld [vmem:[#allocation3 + $0x20] sm:$0xff]
      %v1646 = vld [vmem:[#allocation3 + $0x28] sm:$0xff]
      %v1647 = vld [vmem:[#allocation3 + $0x30] sm:$0xff]
      %v1648 = vld [vmem:[#allocation3 + $0x38] sm:$0xff]
      %v1649 = vld [vmem:[#allocation3 + $0x40] sm:$0xff]
      %v1650 = vld [vmem:[#allocation3 + $0x48] sm:$0xff]
      %v1651 = vld [vmem:[#allocation3 + $0x50] sm:$0xff]
      %v1652 = vld [vmem:[#allocation3 + $0x58] sm:$0xff]
      %v1653 = vld [vmem:[#allocation3 + $0x60] sm:$0xff]
      %v1654 = vld [vmem:[#allocation3 + $0x68] sm:$0xff]
      %v1655 = vld [vmem:[#allocation3 + $0x70] sm:$0xff]
      %v1656 = vld [vmem:[#allocation3 + $0x78] sm:$0xff]
      %v1657 = vld [vmem:[#allocation3 + $0x80] sm:$0xff]
      %v1658 = vld [vmem:[#allocation3 + $0x88] sm:$0xff]
      %v1659 = vld [vmem:[#allocation3 + $0x90] sm:$0xff]
      %v1660 = vld [vmem:[#allocation3 + $0x98] sm:$0xff]
      %v1661 = vld [vmem:[#allocation3 + $0xa0] sm:$0xff]
      %v1662 = vld [vmem:[#allocation3 + $0xa8] sm:$0xff]
      %v1663 = vld [vmem:[#allocation3 + $0xb0] sm:$0xff]
      %v1664 = vld [vmem:[#allocation3 + $0xb8] sm:$0xff]
      %v1665 = vld [vmem:[#allocation3 + $0xc0] sm:$0xff]
      %v1666 = vld [vmem:[#allocation3 + $0xc8] sm:$0xff]
      %v1667 = vld [vmem:[#allocation3 + $0xd0] sm:$0xff]
      %v1668 = vld [vmem:[#allocation3 + $0xd8] sm:$0xff]
      %v1669 = vld [vmem:[#allocation3 + $0xe0] sm:$0xff]
      %v1670 = vld [vmem:[#allocation3 + $0xe8] sm:$0xff]
      %v1671 = vld [vmem:[#allocation3 + $0xf0] sm:$0xff]
      %v1672 = vld [vmem:[#allocation3 + $0xf8] sm:$0xff]
      %v1673 = vld [vmem:[#allocation3 + $0x100] sm:$0xff]
      %v1674 = vld [vmem:[#allocation3 + $0x108] sm:$0xff]
      %v1675 = vld [vmem:[#allocation3 + $0x110] sm:$0xff]
      %v1676 = vld [vmem:[#allocation3 + $0x118] sm:$0xff]
      %v1677 = vld [vmem:[#allocation3 + $0x120] sm:$0xff]
      %v1678 = vld [vmem:[#allocation3 + $0x128] sm:$0xff]
      %v1679 = vld [vmem:[#allocation3 + $0x130] sm:$0xff]
      %v1680 = vld [vmem:[#allocation3 + $0x138] sm:$0xff]
      %v1681 = vld [vmem:[#allocation3 + $0x140] sm:$0xff]
      %v1682 = vld [vmem:[#allocation3 + $0x148] sm:$0xff]
      %v1683 = vld [vmem:[#allocation3 + $0x150] sm:$0xff]
      %v1684 = vld [vmem:[#allocation3 + $0x158] sm:$0xff]
      %v1685 = vld [vmem:[#allocation3 + $0x160] sm:$0xff]
      %v1686 = vld [vmem:[#allocation3 + $0x168] sm:$0xff]
      %v1687 = vld [vmem:[#allocation3 + $0x170] sm:$0xff]
      %v1688 = vld [vmem:[#allocation3 + $0x178] sm:$0xff]
      %v1689 = vld [vmem:[#allocation3 + $0x180] sm:$0xff]
      %v1690 = vld [vmem:[#allocation3 + $0x188] sm:$0xff]
      %v1691 = vld [vmem:[#allocation3 + $0x190] sm:$0xff]
      %v1692 = vld [vmem:[#allocation3 + $0x198] sm:$0xff]
      %v1693 = vld [vmem:[#allocation3 + $0x1a0] sm:$0xff]
      %v1694 = vld [vmem:[#allocation3 + $0x1a8] sm:$0xff]
      %v1695 = vld [vmem:[#allocation3 + $0x1b0] sm:$0xff]
      %v1696 = vld [vmem:[#allocation3 + $0x1b8] sm:$0xff]
      %v1697 = vld [vmem:[#allocation3 + $0x1c0] sm:$0xff]
      %v1698 = vld [vmem:[#allocation3 + $0x1c8] sm:$0xff]
      %v1699 = vld [vmem:[#allocation3 + $0x1d0] sm:$0xff]
      %v1700 = vld [vmem:[#allocation3 + $0x1d8] sm:$0xff]
      %v1701 = vld [vmem:[#allocation3 + $0x1e0] sm:$0xff]
      %v1702 = vld [vmem:[#allocation3 + $0x1e8] sm:$0xff]
      %v1703 = vld [vmem:[#allocation3 + $0x1f0] sm:$0xff]
      %v1704 = vld [vmem:[#allocation3 + $0x1f8] sm:$0xff]
      %v1713 = vunpack.c.l.b16 %v1633
      %v1714 = vunpack.c.h.b16 %v1633
      %v1715 = vunpack.c.l.b16 %v1634
      %v1716 = vunpack.c.h.b16 %v1634
      %v1717 = vunpack.c.l.b16 %v1635
      %v1718 = vunpack.c.h.b16 %v1635
      %v1719 = vunpack.c.l.b16 %v1636
      %v1720 = vunpack.c.h.b16 %v1636
      %v1721 = vunpack.c.l.b16 %v1637
      %v1722 = vunpack.c.h.b16 %v1637
      %v1723 = vunpack.c.l.b16 %v1638
      %v1724 = vunpack.c.h.b16 %v1638
      %v1725 = vunpack.c.l.b16 %v1639
      %v1726 = vunpack.c.h.b16 %v1639
      %v1727 = vunpack.c.l.b16 %v1640
      %v1728 = vunpack.c.h.b16 %v1640
      %v1729 = vpack.c.b16 %v1715, %v1713
      %v1730 = vpack.c.b16 %v1716, %v1714
      %v1731 = vpack.c.b16 %v1719, %v1717
      %v1732 = vpack.c.b16 %v1720, %v1718
      %v1733 = vpack.c.b16 %v1723, %v1721
      %v1734 = vpack.c.b16 %v1724, %v1722
      %v1735 = vpack.c.b16 %v1727, %v1725
      %v1736 = vpack.c.b16 %v1728, %v1726
      %v1809 = vunpack.c.l.b16 %v1641
      %v1810 = vunpack.c.h.b16 %v1641
      %v1811 = vunpack.c.l.b16 %v1642
      %v1812 = vunpack.c.h.b16 %v1642
      %v1813 = vunpack.c.l.b16 %v1643
      %v1814 = vunpack.c.h.b16 %v1643
      %v1815 = vunpack.c.l.b16 %v1644
      %v1816 = vunpack.c.h.b16 %v1644
      %v1817 = vunpack.c.l.b16 %v1645
      %v1818 = vunpack.c.h.b16 %v1645
      %v1819 = vunpack.c.l.b16 %v1646
      %v1820 = vunpack.c.h.b16 %v1646
      %v1821 = vunpack.c.l.b16 %v1647
      %v1822 = vunpack.c.h.b16 %v1647
      %v1823 = vunpack.c.l.b16 %v1648
      %v1824 = vunpack.c.h.b16 %v1648
      %v1825 = vunpack.c.l.b16 %v1649
      %v1826 = vunpack.c.h.b16 %v1649
      %v1827 = vunpack.c.l.b16 %v1650
      %v1828 = vunpack.c.h.b16 %v1650
      %v1829 = vunpack.c.l.b16 %v1651
      %v1830 = vunpack.c.h.b16 %v1651
      %v1831 = vunpack.c.l.b16 %v1652
      %v1832 = vunpack.c.h.b16 %v1652
      %v1833 = vunpack.c.l.b16 %v1653
      %v1834 = vunpack.c.h.b16 %v1653
      %v1835 = vunpack.c.l.b16 %v1654
      %v1836 = vunpack.c.h.b16 %v1654
      %v1837 = vunpack.c.l.b16 %v1655
      %v1838 = vunpack.c.h.b16 %v1655
      %v1839 = vunpack.c.l.b16 %v1656
      %v1840 = vunpack.c.h.b16 %v1656
      %v1841 = vunpack.c.l.b16 %v1657
      %v1842 = vunpack.c.h.b16 %v1657
      %v1843 = vunpack.c.l.b16 %v1658
      %v1844 = vunpack.c.h.b16 %v1658
      %v1845 = vunpack.c.l.b16 %v1659
      %v1846 = vunpack.c.h.b16 %v1659
      %v1847 = vunpack.c.l.b16 %v1660
      %v1848 = vunpack.c.h.b16 %v1660
      %v1849 = vunpack.c.l.b16 %v1661
      %v1850 = vunpack.c.h.b16 %v1661
      %v1851 = vunpack.c.l.b16 %v1662
      %v1852 = vunpack.c.h.b16 %v1662
      %v1853 = vunpack.c.l.b16 %v1663
      %v1854 = vunpack.c.h.b16 %v1663
      %v1855 = vunpack.c.l.b16 %v1664
      %v1856 = vunpack.c.h.b16 %v1664
      %v1857 = vunpack.c.l.b16 %v1665
      %v1858 = vunpack.c.h.b16 %v1665
      %v1859 = vunpack.c.l.b16 %v1666
      %v1860 = vunpack.c.h.b16 %v1666
      %v1861 = vunpack.c.l.b16 %v1667
      %v1862 = vunpack.c.h.b16 %v1667
      %v1863 = vunpack.c.l.b16 %v1668
      %v1864 = vunpack.c.h.b16 %v1668
      %v1865 = vunpack.c.l.b16 %v1669
      %v1866 = vunpack.c.h.b16 %v1669
      %v1867 = vunpack.c.l.b16 %v1670
      %v1868 = vunpack.c.h.b16 %v1670
      %v1869 = vunpack.c.l.b16 %v1671
      %v1870 = vunpack.c.h.b16 %v1671
      %v1871 = vunpack.c.l.b16 %v1672
      %v1872 = vunpack.c.h.b16 %v1672
      %v1873 = vunpack.c.l.b16 %v1673
      %v1874 = vunpack.c.h.b16 %v1673
      %v1875 = vunpack.c.l.b16 %v1674
      %v1876 = vunpack.c.h.b16 %v1674
      %v1877 = vunpack.c.l.b16 %v1675
      %v1878 = vunpack.c.h.b16 %v1675
      %v1879 = vunpack.c.l.b16 %v1676
      %v1880 = vunpack.c.h.b16 %v1676
      %v1881 = vunpack.c.l.b16 %v1677
      %v1882 = vunpack.c.h.b16 %v1677
      %v1883 = vunpack.c.l.b16 %v1678
      %v1884 = vunpack.c.h.b16 %v1678
      %v1885 = vunpack.c.l.b16 %v1679
      %v1886 = vunpack.c.h.b16 %v1679
      %v1887 = vunpack.c.l.b16 %v1680
      %v1888 = vunpack.c.h.b16 %v1680
      %v1889 = vunpack.c.l.b16 %v1681
      %v1890 = vunpack.c.h.b16 %v1681
      %v1891 = vunpack.c.l.b16 %v1682
      %v1892 = vunpack.c.h.b16 %v1682
      %v1893 = vunpack.c.l.b16 %v1683
      %v1894 = vunpack.c.h.b16 %v1683
      %v1895 = vunpack.c.l.b16 %v1684
      %v1896 = vunpack.c.h.b16 %v1684
      %v1897 = vunpack.c.l.b16 %v1685
      %v1898 = vunpack.c.h.b16 %v1685
      %v1899 = vunpack.c.l.b16 %v1686
      %v1900 = vunpack.c.h.b16 %v1686
      %v1901 = vunpack.c.l.b16 %v1687
      %v1902 = vunpack.c.h.b16 %v1687
      %v1903 = vunpack.c.l.b16 %v1688
      %v1904 = vunpack.c.h.b16 %v1688
      %v1905 = vunpack.c.l.b16 %v1689
      %v1906 = vunpack.c.h.b16 %v1689
      %v1907 = vunpack.c.l.b16 %v1690
      %v1908 = vunpack.c.h.b16 %v1690
      %v1909 = vunpack.c.l.b16 %v1691
      %v1910 = vunpack.c.h.b16 %v1691
      %v1911 = vunpack.c.l.b16 %v1692
      %v1912 = vunpack.c.h.b16 %v1692
      %v1913 = vunpack.c.l.b16 %v1693
      %v1914 = vunpack.c.h.b16 %v1693
      %v1915 = vunpack.c.l.b16 %v1694
      %v1916 = vunpack.c.h.b16 %v1694
      %v1917 = vunpack.c.l.b16 %v1695
      %v1918 = vunpack.c.h.b16 %v1695
      %v1919 = vunpack.c.l.b16 %v1696
      %v1920 = vunpack.c.h.b16 %v1696
      %v1921 = vunpack.c.l.b16 %v1697
      %v1922 = vunpack.c.h.b16 %v1697
      %v1923 = vunpack.c.l.b16 %v1698
      %v1924 = vunpack.c.h.b16 %v1698
      %v1925 = vunpack.c.l.b16 %v1699
      %v1926 = vunpack.c.h.b16 %v1699
      %v1927 = vunpack.c.l.b16 %v1700
      %v1928 = vunpack.c.h.b16 %v1700
      %v1929 = vunpack.c.l.b16 %v1701
      %v1930 = vunpack.c.h.b16 %v1701
      %v1931 = vunpack.c.l.b16 %v1702
      %v1932 = vunpack.c.h.b16 %v1702
      %v1933 = vunpack.c.l.b16 %v1703
      %v1934 = vunpack.c.h.b16 %v1703
      %v1935 = vunpack.c.l.b16 %v1704
      %v1936 = vunpack.c.h.b16 %v1704
      %v1937 = vpack.c.b16 %v1813, %v1809
      %v1938 = vpack.c.b16 %v1814, %v1810
      %v1939 = vpack.c.b16 %v1815, %v1811
      %v1940 = vpack.c.b16 %v1816, %v1812
      %v1941 = vpack.c.b16 %v1821, %v1817
      %v1942 = vpack.c.b16 %v1822, %v1818
      %v1943 = vpack.c.b16 %v1823, %v1819
      %v1944 = vpack.c.b16 %v1824, %v1820
      %v1945 = vpack.c.b16 %v1829, %v1825
      %v1946 = vpack.c.b16 %v1830, %v1826
      %v1947 = vpack.c.b16 %v1831, %v1827
      %v1948 = vpack.c.b16 %v1832, %v1828
      %v1949 = vpack.c.b16 %v1837, %v1833
      %v1950 = vpack.c.b16 %v1838, %v1834
      %v1951 = vpack.c.b16 %v1839, %v1835
      %v1952 = vpack.c.b16 %v1840, %v1836
      %v1953 = vpack.c.b16 %v1845, %v1841
      %v1954 = vpack.c.b16 %v1846, %v1842
      %v1955 = vpack.c.b16 %v1847, %v1843
      %v1956 = vpack.c.b16 %v1848, %v1844
      %v1957 = vpack.c.b16 %v1853, %v1849
      %v1958 = vpack.c.b16 %v1854, %v1850
      %v1959 = vpack.c.b16 %v1855, %v1851
      %v1960 = vpack.c.b16 %v1856, %v1852
      %v1961 = vpack.c.b16 %v1861, %v1857
      %v1962 = vpack.c.b16 %v1862, %v1858
      %v1963 = vpack.c.b16 %v1863, %v1859
      %v1964 = vpack.c.b16 %v1864, %v1860
      %v1965 = vpack.c.b16 %v1869, %v1865
      %v1966 = vpack.c.b16 %v1870, %v1866
      %v1967 = vpack.c.b16 %v1871, %v1867
      %v1968 = vpack.c.b16 %v1872, %v1868
      %v1969 = vpack.c.b16 %v1877, %v1873
      %v1970 = vpack.c.b16 %v1878, %v1874
      %v1971 = vpack.c.b16 %v1879, %v1875
      %v1972 = vpack.c.b16 %v1880, %v1876
      %v1973 = vpack.c.b16 %v1885, %v1881
      %v1974 = vpack.c.b16 %v1886, %v1882
      %v1975 = vpack.c.b16 %v1887, %v1883
      %v1976 = vpack.c.b16 %v1888, %v1884
      %v1977 = vpack.c.b16 %v1893, %v1889
      %v1978 = vpack.c.b16 %v1894, %v1890
      %v1979 = vpack.c.b16 %v1895, %v1891
      %v1980 = vpack.c.b16 %v1896, %v1892
      %v1981 = vpack.c.b16 %v1901, %v1897
      %v1982 = vpack.c.b16 %v1902, %v1898
      %v1983 = vpack.c.b16 %v1903, %v1899
      %v1984 = vpack.c.b16 %v1904, %v1900
      %v1985 = vpack.c.b16 %v1909, %v1905
      %v1986 = vpack.c.b16 %v1910, %v1906
      %v1987 = vpack.c.b16 %v1911, %v1907
      %v1988 = vpack.c.b16 %v1912, %v1908
      %v1989 = vpack.c.b16 %v1917, %v1913
      %v1990 = vpack.c.b16 %v1918, %v1914
      %v1991 = vpack.c.b16 %v1919, %v1915
      %v1992 = vpack.c.b16 %v1920, %v1916
      %v1993 = vpack.c.b16 %v1925, %v1921
      %v1994 = vpack.c.b16 %v1926, %v1922
      %v1995 = vpack.c.b16 %v1927, %v1923
      %v1996 = vpack.c.b16 %v1928, %v1924
      %v1997 = vpack.c.b16 %v1933, %v1929
      %v1998 = vpack.c.b16 %v1934, %v1930
      %v1999 = vpack.c.b16 %v1935, %v1931
      %v2000 = vpack.c.b16 %v1936, %v1932
      %2065 = vmatpush.bf16.msra.mxu0 %v1965
      %2066 = vmatpush.bf16.msra.mxu0 %v1961
      %2067 = vmatpush.bf16.msra.mxu0 %v1957
      %2068 = vmatpush.bf16.msra.mxu0 %v1953
      %2069 = vmatpush.bf16.msra.mxu0 %v1949
      %2070 = vmatpush.bf16.msra.mxu0 %v1945
      %2071 = vmatpush.bf16.msra.mxu0 %v1941
      %2072 = vmatpush.bf16.msra.mxu0 %v1937
      %2073 = vmatmul.bf16.gmra.mxu0 %v1729
      %v2074 = vpop.f32.mrf.mxu0
      %v2075 = vadd.f32 0.0, %v2074
      %v2076 = vpop.f32.mrf.mxu0
      %v2077 = vadd.f32 0.0, %v2076
      %2078 = vmatmul.bf16.gmra.mxu0 %v1731
      %v2079 = vpop.f32.mrf.mxu0
      %v2080 = vadd.f32 0.0, %v2079
      %v2081 = vpop.f32.mrf.mxu0
      %v2082 = vadd.f32 0.0, %v2081
      %2083 = vmatmul.bf16.gmra.mxu0 %v1733
      %v2084 = vpop.f32.mrf.mxu0
      %v2085 = vadd.f32 0.0, %v2084
      %v2086 = vpop.f32.mrf.mxu0
      %v2087 = vadd.f32 0.0, %v2086
      %2088 = vmatmul.bf16.gmra.mxu0 %v1735
      %v2089 = vpop.f32.mrf.mxu0
      %v2090 = vadd.f32 0.0, %v2089
      %v2091 = vpop.f32.mrf.mxu0
      %v2092 = vadd.f32 0.0, %v2091
      %2093 = vdwg.mxu0
      %2094 = vmatpush.bf16.msra.mxu0 %v1997
      %2095 = vmatpush.bf16.msra.mxu0 %v1993
      %2096 = vmatpush.bf16.msra.mxu0 %v1989
      %2097 = vmatpush.bf16.msra.mxu0 %v1985
      %2098 = vmatpush.bf16.msra.mxu0 %v1981
      %2099 = vmatpush.bf16.msra.mxu0 %v1977
      %2100 = vmatpush.bf16.msra.mxu0 %v1973
      %2101 = vmatpush.bf16.msra.mxu0 %v1969
      %2102 = vmatmul.bf16.gmra.mxu0 %v1730
      %v2103 = vpop.f32.mrf.mxu0
      %v2104 = vadd.f32 %v2075, %v2103
      %v2105 = vpop.f32.mrf.mxu0
      %v2106 = vadd.f32 %v2077, %v2105
      %2107 = vmatmul.bf16.gmra.mxu0 %v1732
      %v2108 = vpop.f32.mrf.mxu0
      %v2109 = vadd.f32 %v2080, %v2108
      %v2110 = vpop.f32.mrf.mxu0
      %v2111 = vadd.f32 %v2082, %v2110
      %2112 = vmatmul.bf16.gmra.mxu0 %v1734
      %v2113 = vpop.f32.mrf.mxu0
      %v2114 = vadd.f32 %v2085, %v2113
      %v2115 = vpop.f32.mrf.mxu0
      %v2116 = vadd.f32 %v2087, %v2115
      %2117 = vmatmul.bf16.gmra.mxu0 %v1736
      %v2118 = vpop.f32.mrf.mxu0
      %v2119 = vadd.f32 %v2090, %v2118
      %v2120 = vpop.f32.mrf.mxu0
      %v2121 = vadd.f32 %v2092, %v2120
      %2122 = vdwg.mxu0
      %2123 = vmatpush.bf16.msra.mxu0 %v1966
      %2124 = vmatpush.bf16.msra.mxu0 %v1962
      %2125 = vmatpush.bf16.msra.mxu0 %v1958
      %2126 = vmatpush.bf16.msra.mxu0 %v1954
      %2127 = vmatpush.bf16.msra.mxu0 %v1950
      %2128 = vmatpush.bf16.msra.mxu0 %v1946
      %2129 = vmatpush.bf16.msra.mxu0 %v1942
      %2130 = vmatpush.bf16.msra.mxu0 %v1938
      %2131 = vmatmul.bf16.gmra.mxu0 %v1729
      %v2132 = vpop.f32.mrf.mxu0
      %v2133 = vadd.f32 0.0, %v2132
      %v2134 = vpop.f32.mrf.mxu0
      %v2135 = vadd.f32 0.0, %v2134
      %2136 = vmatmul.bf16.gmra.mxu0 %v1731
      %v2137 = vpop.f32.mrf.mxu0
      %v2138 = vadd.f32 0.0, %v2137
      %v2139 = vpop.f32.mrf.mxu0
      %v2140 = vadd.f32 0.0, %v2139
      %2141 = vmatmul.bf16.gmra.mxu0 %v1733
      %v2142 = vpop.f32.mrf.mxu0
      %v2143 = vadd.f32 0.0, %v2142
      %v2144 = vpop.f32.mrf.mxu0
      %v2145 = vadd.f32 0.0, %v2144
      %2146 = vmatmul.bf16.gmra.mxu0 %v1735
      %v2147 = vpop.f32.mrf.mxu0
      %v2148 = vadd.f32 0.0, %v2147
      %v2149 = vpop.f32.mrf.mxu0
      %v2150 = vadd.f32 0.0, %v2149
      %2151 = vdwg.mxu0
      %2152 = vmatpush.bf16.msra.mxu0 %v1998
      %2153 = vmatpush.bf16.msra.mxu0 %v1994
      %2154 = vmatpush.bf16.msra.mxu0 %v1990
      %2155 = vmatpush.bf16.msra.mxu0 %v1986
      %2156 = vmatpush.bf16.msra.mxu0 %v1982
      %2157 = vmatpush.bf16.msra.mxu0 %v1978
      %2158 = vmatpush.bf16.msra.mxu0 %v1974
      %2159 = vmatpush.bf16.msra.mxu0 %v1970
      %2160 = vmatmul.bf16.gmra.mxu0 %v1730
      %v2161 = vpop.f32.mrf.mxu0
      %v2162 = vadd.f32 %v2133, %v2161
      %v2163 = vpop.f32.mrf.mxu0
      %v2164 = vadd.f32 %v2135, %v2163
      %2165 = vmatmul.bf16.gmra.mxu0 %v1732
      %v2166 = vpop.f32.mrf.mxu0
      %v2167 = vadd.f32 %v2138, %v2166
      %v2168 = vpop.f32.mrf.mxu0
      %v2169 = vadd.f32 %v2140, %v2168
      %2170 = vmatmul.bf16.gmra.mxu0 %v1734
      %v2171 = vpop.f32.mrf.mxu0
      %v2172 = vadd.f32 %v2143, %v2171
      %v2173 = vpop.f32.mrf.mxu0
      %v2174 = vadd.f32 %v2145, %v2173
      %2175 = vmatmul.bf16.gmra.mxu0 %v1736
      %v2176 = vpop.f32.mrf.mxu0
      %v2177 = vadd.f32 %v2148, %v2176
      %v2178 = vpop.f32.mrf.mxu0
      %v2179 = vadd.f32 %v2150, %v2178
      %2180 = vdwg.mxu0
      %2181 = vmatpush.bf16.msra.mxu0 %v1967
      %2182 = vmatpush.bf16.msra.mxu0 %v1963
      %2183 = vmatpush.bf16.msra.mxu0 %v1959
      %2184 = vmatpush.bf16.msra.mxu0 %v1955
      %2185 = vmatpush.bf16.msra.mxu0 %v1951
      %2186 = vmatpush.bf16.msra.mxu0 %v1947
      %2187 = vmatpush.bf16.msra.mxu0 %v1943
      %2188 = vmatpush.bf16.msra.mxu0 %v1939
      %2189 = vmatmul.bf16.gmra.mxu0 %v1729
      %v2190 = vpop.f32.mrf.mxu0
      %v2191 = vadd.f32 0.0, %v2190
      %v2192 = vpop.f32.mrf.mxu0
      %v2193 = vadd.f32 0.0, %v2192
      %2194 = vmatmul.bf16.gmra.mxu0 %v1731
      %v2195 = vpop.f32.mrf.mxu0
      %v2196 = vadd.f32 0.0, %v2195
      %v2197 = vpop.f32.mrf.mxu0
      %v2198 = vadd.f32 0.0, %v2197
      %2199 = vmatmul.bf16.gmra.mxu0 %v1733
      %v2200 = vpop.f32.mrf.mxu0
      %v2201 = vadd.f32 0.0, %v2200
      %v2202 = vpop.f32.mrf.mxu0
      %v2203 = vadd.f32 0.0, %v2202
      %2204 = vmatmul.bf16.gmra.mxu0 %v1735
      %v2205 = vpop.f32.mrf.mxu0
      %v2206 = vadd.f32 0.0, %v2205
      %v2207 = vpop.f32.mrf.mxu0
      %v2208 = vadd.f32 0.0, %v2207
      %2209 = vdwg.mxu0
      %2210 = vmatpush.bf16.msra.mxu0 %v1999
      %2211 = vmatpush.bf16.msra.mxu0 %v1995
      %2212 = vmatpush.bf16.msra.mxu0 %v1991
      %2213 = vmatpush.bf16.msra.mxu0 %v1987
      %2214 = vmatpush.bf16.msra.mxu0 %v1983
      %2215 = vmatpush.bf16.msra.mxu0 %v1979
      %2216 = vmatpush.bf16.msra.mxu0 %v1975
      %2217 = vmatpush.bf16.msra.mxu0 %v1971
      %2218 = vmatmul.bf16.gmra.mxu0 %v1730
      %v2219 = vpop.f32.mrf.mxu0
      %v2220 = vadd.f32 %v2191, %v2219
      %v2221 = vpop.f32.mrf.mxu0
      %v2222 = vadd.f32 %v2193, %v2221
      %2223 = vmatmul.bf16.gmra.mxu0 %v1732
      %v2224 = vpop.f32.mrf.mxu0
      %v2225 = vadd.f32 %v2196, %v2224
      %v2226 = vpop.f32.mrf.mxu0
      %v2227 = vadd.f32 %v2198, %v2226
      %2228 = vmatmul.bf16.gmra.mxu0 %v1734
      %v2229 = vpop.f32.mrf.mxu0
      %v2230 = vadd.f32 %v2201, %v2229
      %v2231 = vpop.f32.mrf.mxu0
      %v2232 = vadd.f32 %v2203, %v2231
      %2233 = vmatmul.bf16.gmra.mxu0 %v1736
      %v2234 = vpop.f32.mrf.mxu0
      %v2235 = vadd.f32 %v2206, %v2234
      %v2236 = vpop.f32.mrf.mxu0
      %v2237 = vadd.f32 %v2208, %v2236
      %2238 = vdwg.mxu0
      %2239 = vmatpush.bf16.msra.mxu0 %v1968
      %2240 = vmatpush.bf16.msra.mxu0 %v1964
      %2241 = vmatpush.bf16.msra.mxu0 %v1960
      %2242 = vmatpush.bf16.msra.mxu0 %v1956
      %2243 = vmatpush.bf16.msra.mxu0 %v1952
      %2244 = vmatpush.bf16.msra.mxu0 %v1948
      %2245 = vmatpush.bf16.msra.mxu0 %v1944
      %2246 = vmatpush.bf16.msra.mxu0 %v1940
      %2247 = vmatmul.bf16.gmra.mxu0 %v1729
      %v2248 = vpop.f32.mrf.mxu0
      %v2249 = vadd.f32 0.0, %v2248
      %v2250 = vpop.f32.mrf.mxu0
      %v2251 = vadd.f32 0.0, %v2250
      %2252 = vmatmul.bf16.gmra.mxu0 %v1731
      %v2253 = vpop.f32.mrf.mxu0
      %v2254 = vadd.f32 0.0, %v2253
      %v2255 = vpop.f32.mrf.mxu0
      %v2256 = vadd.f32 0.0, %v2255
      %2257 = vmatmul.bf16.gmra.mxu0 %v1733
      %v2258 = vpop.f32.mrf.mxu0
      %v2259 = vadd.f32 0.0, %v2258
      %v2260 = vpop.f32.mrf.mxu0
      %v2261 = vadd.f32 0.0, %v2260
      %2262 = vmatmul.bf16.gmra.mxu0 %v1735
      %v2263 = vpop.f32.mrf.mxu0
      %v2264 = vadd.f32 0.0, %v2263
      %v2265 = vpop.f32.mrf.mxu0
      %v2266 = vadd.f32 0.0, %v2265
      %2267 = vdwg.mxu0
      %2268 = vmatpush.bf16.msra.mxu0 %v2000
      %2269 = vmatpush.bf16.msra.mxu0 %v1996
      %2270 = vmatpush.bf16.msra.mxu0 %v1992
      %2271 = vmatpush.bf16.msra.mxu0 %v1988
      %2272 = vmatpush.bf16.msra.mxu0 %v1984
      %2273 = vmatpush.bf16.msra.mxu0 %v1980
      %2274 = vmatpush.bf16.msra.mxu0 %v1976
      %2275 = vmatpush.bf16.msra.mxu0 %v1972
      %2276 = vmatmul.bf16.gmra.mxu0 %v1730
      %v2277 = vpop.f32.mrf.mxu0
      %v2278 = vadd.f32 %v2249, %v2277
      %v2279 = vpop.f32.mrf.mxu0
      %v2280 = vadd.f32 %v2251, %v2279
      %2281 = vmatmul.bf16.gmra.mxu0 %v1732
      %v2282 = vpop.f32.mrf.mxu0
      %v2283 = vadd.f32 %v2254, %v2282
      %v2284 = vpop.f32.mrf.mxu0
      %v2285 = vadd.f32 %v2256, %v2284
      %2286 = vmatmul.bf16.gmra.mxu0 %v1734
      %v2287 = vpop.f32.mrf.mxu0
      %v2288 = vadd.f32 %v2259, %v2287
      %v2289 = vpop.f32.mrf.mxu0
      %v2290 = vadd.f32 %v2261, %v2289
      %2291 = vmatmul.bf16.gmra.mxu0 %v1736
      %v2292 = vpop.f32.mrf.mxu0
      %v2293 = vadd.f32 %v2264, %v2292
      %v2294 = vpop.f32.mrf.mxu0
      %v2295 = vadd.f32 %v2266, %v2294
      %2296 = vdwg.mxu0
      %v2297 = vld [vmem:[%s5 + $0x80] sm:$0xff]
      %v2298 = vld [vmem:[%s5 + $0x88] sm:$0xff]
      %v2299 = vld [vmem:[%s5 + $0x90] sm:$0xff]
      %v2300 = vld [vmem:[%s5 + $0x98] sm:$0xff]
      %v2301 = vld [vmem:[%s5 + $0xa0] sm:$0xff]
      %v2302 = vld [vmem:[%s5 + $0xa8] sm:$0xff]
      %v2303 = vld [vmem:[%s5 + $0xb0] sm:$0xff]
      %v2304 = vld [vmem:[%s5 + $0xb8] sm:$0xff]
      %2306 = vset.pattern.permute.xlu0 0
      %2307 = vperm.xlu0 %2306, %v2297
      %v2308 = vpop.permute.xlu0 %2307
      %2311 = vset.pattern.permute.xlu0 0
      %2312 = vperm.xlu0 %2311, %v2298
      %v2313 = vpop.permute.xlu0 %2312
      %2316 = vset.pattern.permute.xlu0 0
      %2317 = vperm.xlu0 %2316, %v2299
      %v2318 = vpop.permute.xlu0 %2317
      %2321 = vset.pattern.permute.xlu0 0
      %2322 = vperm.xlu0 %2321, %v2300
      %v2323 = vpop.permute.xlu0 %2322
      %2326 = vset.pattern.permute.xlu0 0
      %2327 = vperm.xlu0 %2326, %v2301
      %v2328 = vpop.permute.xlu0 %2327
      %2331 = vset.pattern.permute.xlu0 0
      %2332 = vperm.xlu0 %2331, %v2302
      %v2333 = vpop.permute.xlu0 %2332
      %2336 = vset.pattern.permute.xlu0 0
      %2337 = vperm.xlu0 %2336, %v2303
      %v2338 = vpop.permute.xlu0 %2337
      %2341 = vset.pattern.permute.xlu0 0
      %2342 = vperm.xlu0 %2341, %v2304
      %v2343 = vpop.permute.xlu0 %2342
      %v2345 = vmul.f32 %v2104, %v2308
      %v2346 = vmul.f32 %v2162, %v2308
      %v2347 = vmul.f32 %v2220, %v2308
      %v2348 = vmul.f32 %v2278, %v2308
      %v2349 = vmul.f32 %v2106, %v2313
      %v2350 = vmul.f32 %v2164, %v2313
      %v2351 = vmul.f32 %v2222, %v2313
      %v2352 = vmul.f32 %v2280, %v2313
      %v2353 = vmul.f32 %v2109, %v2318
      %v2354 = vmul.f32 %v2167, %v2318
      %v2355 = vmul.f32 %v2225, %v2318
      %v2356 = vmul.f32 %v2283, %v2318
      %v2357 = vmul.f32 %v2111, %v2323
      %v2358 = vmul.f32 %v2169, %v2323
      %v2359 = vmul.f32 %v2227, %v2323
      %v2360 = vmul.f32 %v2285, %v2323
      %v2361 = vmul.f32 %v2114, %v2328
      %v2362 = vmul.f32 %v2172, %v2328
      %v2363 = vmul.f32 %v2230, %v2328
      %v2364 = vmul.f32 %v2288, %v2328
      %v2365 = vmul.f32 %v2116, %v2333
      %v2366 = vmul.f32 %v2174, %v2333
      %v2367 = vmul.f32 %v2232, %v2333
      %v2368 = vmul.f32 %v2290, %v2333
      %v2369 = vmul.f32 %v2119, %v2338
      %v2370 = vmul.f32 %v2177, %v2338
      %v2371 = vmul.f32 %v2235, %v2338
      %v2372 = vmul.f32 %v2293, %v2338
      %v2373 = vmul.f32 %v2121, %v2343
      %v2374 = vmul.f32 %v2179, %v2343
      %v2375 = vmul.f32 %v2237, %v2343
      %v2376 = vmul.f32 %v2295, %v2343
      %v2377 = vld [vmem:[%s5 + $0xc0] sm:$0xff]
      %v2378 = vld [vmem:[%s5 + $0xc8] sm:$0xff]
      %v2379 = vld [vmem:[%s5 + $0xd0] sm:$0xff]
      %v2380 = vld [vmem:[%s5 + $0xd8] sm:$0xff]
      %v2381 = vld [vmem:[%s5 + $0xe0] sm:$0xff]
      %v2382 = vld [vmem:[%s5 + $0xe8] sm:$0xff]
      %v2383 = vld [vmem:[%s5 + $0xf0] sm:$0xff]
      %v2384 = vld [vmem:[%s5 + $0xf8] sm:$0xff]
      %2386 = vset.pattern.permute.xlu0 0
      %2387 = vperm.xlu0 %2386, %v2377
      %v2388 = vpop.permute.xlu0 %2387
      %2391 = vset.pattern.permute.xlu0 0
      %2392 = vperm.xlu0 %2391, %v2378
      %v2393 = vpop.permute.xlu0 %2392
      %2396 = vset.pattern.permute.xlu0 0
      %2397 = vperm.xlu0 %2396, %v2379
      %v2398 = vpop.permute.xlu0 %2397
      %2401 = vset.pattern.permute.xlu0 0
      %2402 = vperm.xlu0 %2401, %v2380
      %v2403 = vpop.permute.xlu0 %2402
      %2406 = vset.pattern.permute.xlu0 0
      %2407 = vperm.xlu0 %2406, %v2381
      %v2408 = vpop.permute.xlu0 %2407
      %2411 = vset.pattern.permute.xlu0 0
      %2412 = vperm.xlu0 %2411, %v2382
      %v2413 = vpop.permute.xlu0 %2412
      %2416 = vset.pattern.permute.xlu0 0
      %2417 = vperm.xlu0 %2416, %v2383
      %v2418 = vpop.permute.xlu0 %2417
      %2421 = vset.pattern.permute.xlu0 0
      %2422 = vperm.xlu0 %2421, %v2384
      %v2423 = vpop.permute.xlu0 %2422
      %v2425 = vadd.f32 %v2345, %v2388
      %v2426 = vadd.f32 %v2346, %v2388
      %v2427 = vadd.f32 %v2347, %v2388
      %v2428 = vadd.f32 %v2348, %v2388
      %v2429 = vadd.f32 %v2349, %v2393
      %v2430 = vadd.f32 %v2350, %v2393
      %v2431 = vadd.f32 %v2351, %v2393
      %v2432 = vadd.f32 %v2352, %v2393
      %v2433 = vadd.f32 %v2353, %v2398
      %v2434 = vadd.f32 %v2354, %v2398
      %v2435 = vadd.f32 %v2355, %v2398
      %v2436 = vadd.f32 %v2356, %v2398
      %v2437 = vadd.f32 %v2357, %v2403
      %v2438 = vadd.f32 %v2358, %v2403
      %v2439 = vadd.f32 %v2359, %v2403
      %v2440 = vadd.f32 %v2360, %v2403
      %v2441 = vadd.f32 %v2361, %v2408
      %v2442 = vadd.f32 %v2362, %v2408
      %v2443 = vadd.f32 %v2363, %v2408
      %v2444 = vadd.f32 %v2364, %v2408
      %v2445 = vadd.f32 %v2365, %v2413
      %v2446 = vadd.f32 %v2366, %v2413
      %v2447 = vadd.f32 %v2367, %v2413
      %v2448 = vadd.f32 %v2368, %v2413
      %v2449 = vadd.f32 %v2369, %v2418
      %v2450 = vadd.f32 %v2370, %v2418
      %v2451 = vadd.f32 %v2371, %v2418
      %v2452 = vadd.f32 %v2372, %v2418
      %v2453 = vadd.f32 %v2373, %v2423
      %v2454 = vadd.f32 %v2374, %v2423
      %v2455 = vadd.f32 %v2375, %v2423
      %v2456 = vadd.f32 %v2376, %v2423
      %v2457 = vmax.f32 %v2425, 0.0
      %v2458 = vmax.f32 %v2426, 0.0
      %v2459 = vmax.f32 %v2427, 0.0
      %v2460 = vmax.f32 %v2428, 0.0
      %v2461 = vmax.f32 %v2429, 0.0
      %v2462 = vmax.f32 %v2430, 0.0
      %v2463 = vmax.f32 %v2431, 0.0
      %v2464 = vmax.f32 %v2432, 0.0
      %v2465 = vmax.f32 %v2433, 0.0
      %v2466 = vmax.f32 %v2434, 0.0
      %v2467 = vmax.f32 %v2435, 0.0
      %v2468 = vmax.f32 %v2436, 0.0
      %v2469 = vmax.f32 %v2437, 0.0
      %v2470 = vmax.f32 %v2438, 0.0
      %v2471 = vmax.f32 %v2439, 0.0
      %v2472 = vmax.f32 %v2440, 0.0
      %v2473 = vmax.f32 %v2441, 0.0
      %v2474 = vmax.f32 %v2442, 0.0
      %v2475 = vmax.f32 %v2443, 0.0
      %v2476 = vmax.f32 %v2444, 0.0
      %v2477 = vmax.f32 %v2445, 0.0
      %v2478 = vmax.f32 %v2446, 0.0
      %v2479 = vmax.f32 %v2447, 0.0
      %v2480 = vmax.f32 %v2448, 0.0
      %v2481 = vmax.f32 %v2449, 0.0
      %v2482 = vmax.f32 %v2450, 0.0
      %v2483 = vmax.f32 %v2451, 0.0
      %v2484 = vmax.f32 %v2452, 0.0
      %v2485 = vmax.f32 %v2453, 0.0
      %v2486 = vmax.f32 %v2454, 0.0
      %v2487 = vmax.f32 %v2455, 0.0
      %v2488 = vmax.f32 %v2456, 0.0
      %v2489 = vpack.c.bf16 %v2461, %v2457
      %v2490 = vpack.c.bf16 %v2462, %v2458
      %v2491 = vpack.c.bf16 %v2463, %v2459
      %v2492 = vpack.c.bf16 %v2464, %v2460
      %v2493 = vpack.c.bf16 %v2469, %v2465
      %v2494 = vpack.c.bf16 %v2470, %v2466
      %v2495 = vpack.c.bf16 %v2471, %v2467
      %v2496 = vpack.c.bf16 %v2472, %v2468
      %v2497 = vpack.c.bf16 %v2477, %v2473
      %v2498 = vpack.c.bf16 %v2478, %v2474
      %v2499 = vpack.c.bf16 %v2479, %v2475
      %v2500 = vpack.c.bf16 %v2480, %v2476
      %v2501 = vpack.c.bf16 %v2485, %v2481
      %v2502 = vpack.c.bf16 %v2486, %v2482
      %v2503 = vpack.c.bf16 %v2487, %v2483
      %v2504 = vpack.c.bf16 %v2488, %v2484
      %v2505 = vld [vmem:[%s3] sm:$0xf]
      %v2506 = vld [vmem:[%s3 + $0x4] sm:$0xf]
      %v2507 = vld [vmem:[%s3 + $0x8] sm:$0xf]
      %v2508 = vld [vmem:[%s3 + $0xc] sm:$0xf]
      %v2513 = vunpack.c.l.b16 %v2505
      %v2514 = vunpack.c.l.b16 %v2506
      %v2515 = vunpack.c.l.b16 %v2507
      %v2516 = vunpack.c.l.b16 %v2508
      %v2517 = vpack.c.b16 %v2514, %v2513
      %v2518 = vpack.c.b16 %v2516, %v2515
      %vm2519 = vcmask 523264
      %v2521 = vsel %vm2519, %v2517, 0
      %v2524 = vsel %vm2519, %v2518, 0
      %2526 = vmatpush.bf16.msra.mxu0 0
      %2527 = vmatpush.bf16.msra.mxu0 0
      %2528 = vmatpush.bf16.msra.mxu0 0
      %2529 = vmatpush.bf16.msra.mxu0 0
      %2530 = vmatpush.bf16.msra.mxu0 %v2501
      %2531 = vmatpush.bf16.msra.mxu0 %v2497
      %2532 = vmatpush.bf16.msra.mxu0 %v2493
      %2533 = vmatpush.bf16.msra.mxu0 %v2489
      %2534 = vmatmul.bf16.gmra.mxu0 %v2521
      %v2535 = vpop.f32.mrf.mxu0
      %v2536 = vadd.f32 0.0, %v2535
      %v2537 = vpop.f32.mrf.mxu0
      %v2538 = vadd.f32 0.0, %v2537
      %2539 = vmatmul.bf16.gmra.mxu0 %v2524
      %v2540 = vpop.f32.mrf.mxu0
      %v2541 = vadd.f32 0.0, %v2540
      %v2542 = vpop.f32.mrf.mxu0
      %v2543 = vadd.f32 0.0, %v2542
      %2544 = vdwg.mxu0
      %2545 = vmatpush.bf16.msra.mxu0 0
      %2546 = vmatpush.bf16.msra.mxu0 0
      %2547 = vmatpush.bf16.msra.mxu0 0
      %2548 = vmatpush.bf16.msra.mxu0 0
      %2549 = vmatpush.bf16.msra.mxu0 %v2502
      %2550 = vmatpush.bf16.msra.mxu0 %v2498
      %2551 = vmatpush.bf16.msra.mxu0 %v2494
      %2552 = vmatpush.bf16.msra.mxu0 %v2490
      %2553 = vmatmul.bf16.gmra.mxu0 %v2521
      %v2554 = vpop.f32.mrf.mxu0
      %v2555 = vadd.f32 0.0, %v2554
      %v2556 = vpop.f32.mrf.mxu0
      %v2557 = vadd.f32 0.0, %v2556
      %2558 = vmatmul.bf16.gmra.mxu0 %v2524
      %v2559 = vpop.f32.mrf.mxu0
      %v2560 = vadd.f32 0.0, %v2559
      %v2561 = vpop.f32.mrf.mxu0
      %v2562 = vadd.f32 0.0, %v2561
      %2563 = vdwg.mxu0
      %2564 = vmatpush.bf16.msra.mxu0 0
      %2565 = vmatpush.bf16.msra.mxu0 0
      %2566 = vmatpush.bf16.msra.mxu0 0
      %2567 = vmatpush.bf16.msra.mxu0 0
      %2568 = vmatpush.bf16.msra.mxu0 %v2503
      %2569 = vmatpush.bf16.msra.mxu0 %v2499
      %2570 = vmatpush.bf16.msra.mxu0 %v2495
      %2571 = vmatpush.bf16.msra.mxu0 %v2491
      %2572 = vmatmul.bf16.gmra.mxu0 %v2521
      %v2573 = vpop.f32.mrf.mxu0
      %v2574 = vadd.f32 0.0, %v2573
      %v2575 = vpop.f32.mrf.mxu0
      %v2576 = vadd.f32 0.0, %v2575
      %2577 = vmatmul.bf16.gmra.mxu0 %v2524
      %v2578 = vpop.f32.mrf.mxu0
      %v2579 = vadd.f32 0.0, %v2578
      %v2580 = vpop.f32.mrf.mxu0
      %v2581 = vadd.f32 0.0, %v2580
      %2582 = vdwg.mxu0
      %2583 = vmatpush.bf16.msra.mxu0 0
      %2584 = vmatpush.bf16.msra.mxu0 0
      %2585 = vmatpush.bf16.msra.mxu0 0
      %2586 = vmatpush.bf16.msra.mxu0 0
      %2587 = vmatpush.bf16.msra.mxu0 %v2504
      %2588 = vmatpush.bf16.msra.mxu0 %v2500
      %2589 = vmatpush.bf16.msra.mxu0 %v2496
      %2590 = vmatpush.bf16.msra.mxu0 %v2492
      %2591 = vmatmul.bf16.gmra.mxu0 %v2521
      %v2592 = vpop.f32.mrf.mxu0
      %v2593 = vadd.f32 0.0, %v2592
      %v2594 = vpop.f32.mrf.mxu0
      %v2595 = vadd.f32 0.0, %v2594
      %2596 = vmatmul.bf16.gmra.mxu0 %v2524
      %v2597 = vpop.f32.mrf.mxu0
      %v2598 = vadd.f32 0.0, %v2597
      %v2599 = vpop.f32.mrf.mxu0
      %v2600 = vadd.f32 0.0, %v2599
      %2601 = vdwg.mxu0
      %v2602 = vld [vmem:[%s5 + $0x100] sm:$0xff]
      %v2603 = vld [vmem:[%s5 + $0x108] sm:$0xff]
      %v2604 = vld [vmem:[%s5 + $0x110] sm:$0xff]
      %v2605 = vld [vmem:[%s5 + $0x118] sm:$0xff]
      %2607 = vset.pattern.permute.xlu0 0
      %2608 = vperm.xlu0 %2607, %v2602
      %v2609 = vpop.permute.xlu0 %2608
      %2612 = vset.pattern.permute.xlu0 0
      %2613 = vperm.xlu0 %2612, %v2603
      %v2614 = vpop.permute.xlu0 %2613
      %2617 = vset.pattern.permute.xlu0 0
      %2618 = vperm.xlu0 %2617, %v2604
      %v2619 = vpop.permute.xlu0 %2618
      %2622 = vset.pattern.permute.xlu0 0
      %2623 = vperm.xlu0 %2622, %v2605
      %v2624 = vpop.permute.xlu0 %2623
      %v2626 = vmul.f32 %v2536, %v2609
      %v2627 = vmul.f32 %v2555, %v2609
      %v2628 = vmul.f32 %v2574, %v2609
      %v2629 = vmul.f32 %v2593, %v2609
      %v2630 = vmul.f32 %v2538, %v2614
      %v2631 = vmul.f32 %v2557, %v2614
      %v2632 = vmul.f32 %v2576, %v2614
      %v2633 = vmul.f32 %v2595, %v2614
      %v2634 = vmul.f32 %v2541, %v2619
      %v2635 = vmul.f32 %v2560, %v2619
      %v2636 = vmul.f32 %v2579, %v2619
      %v2637 = vmul.f32 %v2598, %v2619
      %v2638 = vmul.f32 %v2543, %v2624
      %v2639 = vmul.f32 %v2562, %v2624
      %v2640 = vmul.f32 %v2581, %v2624
      %v2641 = vmul.f32 %v2600, %v2624
      %v2642 = vld [vmem:[%s5 + $0x120] sm:$0xff]
      %v2643 = vld [vmem:[%s5 + $0x128] sm:$0xff]
      %v2644 = vld [vmem:[%s5 + $0x130] sm:$0xff]
      %v2645 = vld [vmem:[%s5 + $0x138] sm:$0xff]
      %2647 = vset.pattern.permute.xlu0 0
      %2648 = vperm.xlu0 %2647, %v2642
      %v2649 = vpop.permute.xlu0 %2648
      %2652 = vset.pattern.permute.xlu0 0
      %2653 = vperm.xlu0 %2652, %v2643
      %v2654 = vpop.permute.xlu0 %2653
      %2657 = vset.pattern.permute.xlu0 0
      %2658 = vperm.xlu0 %2657, %v2644
      %v2659 = vpop.permute.xlu0 %2658
      %2662 = vset.pattern.permute.xlu0 0
      %2663 = vperm.xlu0 %2662, %v2645
      %v2664 = vpop.permute.xlu0 %2663
      %v2666 = vadd.f32 %v2626, %v2649
      %v2667 = vadd.f32 %v2627, %v2649
      %v2668 = vadd.f32 %v2628, %v2649
      %v2669 = vadd.f32 %v2629, %v2649
      %v2670 = vadd.f32 %v2630, %v2654
      %v2671 = vadd.f32 %v2631, %v2654
      %v2672 = vadd.f32 %v2632, %v2654
      %v2673 = vadd.f32 %v2633, %v2654
      %v2674 = vadd.f32 %v2634, %v2659
      %v2675 = vadd.f32 %v2635, %v2659
      %v2676 = vadd.f32 %v2636, %v2659
      %v2677 = vadd.f32 %v2637, %v2659
      %v2678 = vadd.f32 %v2638, %v2664
      %v2679 = vadd.f32 %v2639, %v2664
      %v2680 = vadd.f32 %v2640, %v2664
      %v2681 = vadd.f32 %v2641, %v2664
      %v2682 = vmax.f32 %v2666, 0.0
      %v2683 = vmax.f32 %v2667, 0.0
      %v2684 = vmax.f32 %v2668, 0.0
      %v2685 = vmax.f32 %v2669, 0.0
      %v2686 = vmax.f32 %v2670, 0.0
      %v2687 = vmax.f32 %v2671, 0.0
      %v2688 = vmax.f32 %v2672, 0.0
      %v2689 = vmax.f32 %v2673, 0.0
      %v2690 = vmax.f32 %v2674, 0.0
      %v2691 = vmax.f32 %v2675, 0.0
      %v2692 = vmax.f32 %v2676, 0.0
      %v2693 = vmax.f32 %v2677, 0.0
      %v2694 = vmax.f32 %v2678, 0.0
      %v2695 = vmax.f32 %v2679, 0.0
      %v2696 = vmax.f32 %v2680, 0.0
      %v2697 = vmax.f32 %v2681, 0.0
      %v2698 = vpack.c.bf16 %v2686, %v2682
      %v2699 = vpack.c.bf16 %v2687, %v2683
      %v2700 = vpack.c.bf16 %v2688, %v2684
      %v2701 = vpack.c.bf16 %v2689, %v2685
      %v2702 = vpack.c.bf16 %v2694, %v2690
      %v2703 = vpack.c.bf16 %v2695, %v2691
      %v2704 = vpack.c.bf16 %v2696, %v2692
      %v2705 = vpack.c.bf16 %v2697, %v2693
      %v2706 = vld [vmem:[%s4] sm:$0xf]
      %v2707 = vld [vmem:[%s4 + $0x4] sm:$0xf]
      %v2710 = vunpack.c.l.b16 %v2706
      %v2711 = vunpack.c.l.b16 %v2707
      %v2712 = vpack.c.b16 %v2711, %v2710
      %vm2713 = vcmask 261120
      %v2715 = vsel %vm2713, %v2712, 0
      %2717 = vmatpush.bf16.msra.mxu0 0
      %2718 = vmatpush.bf16.msra.mxu0 0
      %2719 = vmatpush.bf16.msra.mxu0 0
      %2720 = vmatpush.bf16.msra.mxu0 0
      %2721 = vmatpush.bf16.msra.mxu0 0
      %2722 = vmatpush.bf16.msra.mxu0 0
      %2723 = vmatpush.bf16.msra.mxu0 %v2702
      %2724 = vmatpush.bf16.msra.mxu0 %v2698
      %2725 = vmatmul.bf16.gmra.mxu0 %v2715
      %v2726 = vpop.f32.mrf.mxu0
      %v2727 = vadd.f32 0.0, %v2726
      %v2728 = vpop.f32.mrf.mxu0
      %v2729 = vadd.f32 0.0, %v2728
      %2730 = vdwg.mxu0
      %2731 = vmatpush.bf16.msra.mxu0 0
      %2732 = vmatpush.bf16.msra.mxu0 0
      %2733 = vmatpush.bf16.msra.mxu0 0
      %2734 = vmatpush.bf16.msra.mxu0 0
      %2735 = vmatpush.bf16.msra.mxu0 0
      %2736 = vmatpush.bf16.msra.mxu0 0
      %2737 = vmatpush.bf16.msra.mxu0 %v2703
      %2738 = vmatpush.bf16.msra.mxu0 %v2699
      %2739 = vmatmul.bf16.gmra.mxu0 %v2715
      %v2740 = vpop.f32.mrf.mxu0
      %v2741 = vadd.f32 0.0, %v2740
      %v2742 = vpop.f32.mrf.mxu0
      %v2743 = vadd.f32 0.0, %v2742
      %2744 = vdwg.mxu0
      %2745 = vmatpush.bf16.msra.mxu0 0
      %2746 = vmatpush.bf16.msra.mxu0 0
      %2747 = vmatpush.bf16.msra.mxu0 0
      %2748 = vmatpush.bf16.msra.mxu0 0
      %2749 = vmatpush.bf16.msra.mxu0 0
      %2750 = vmatpush.bf16.msra.mxu0 0
      %2751 = vmatpush.bf16.msra.mxu0 %v2704
      %2752 = vmatpush.bf16.msra.mxu0 %v2700
      %2753 = vmatmul.bf16.gmra.mxu0 %v2715
      %v2754 = vpop.f32.mrf.mxu0
      %v2755 = vadd.f32 0.0, %v2754
      %v2756 = vpop.f32.mrf.mxu0
      %v2757 = vadd.f32 0.0, %v2756
      %2758 = vdwg.mxu0
      %2759 = vmatpush.bf16.msra.mxu0 0
      %2760 = vmatpush.bf16.msra.mxu0 0
      %2761 = vmatpush.bf16.msra.mxu0 0
      %2762 = vmatpush.bf16.msra.mxu0 0
      %2763 = vmatpush.bf16.msra.mxu0 0
      %2764 = vmatpush.bf16.msra.mxu0 0
      %2765 = vmatpush.bf16.msra.mxu0 %v2705
      %2766 = vmatpush.bf16.msra.mxu0 %v2701
      %2767 = vmatmul.bf16.gmra.mxu0 %v2715
      %v2768 = vpop.f32.mrf.mxu0
      %v2769 = vadd.f32 0.0, %v2768
      %v2770 = vpop.f32.mrf.mxu0
      %v2771 = vadd.f32 0.0, %v2770
      %2772 = vdwg.mxu0
      %v2773 = vld [vmem:[%s5 + $0x140] sm:$0xff]
      %v2774 = vld [vmem:[%s5 + $0x148] sm:$0xff]
      %2776 = vset.pattern.permute.xlu0 0
      %2777 = vperm.xlu0 %2776, %v2773
      %v2778 = vpop.permute.xlu0 %2777
      %2781 = vset.pattern.permute.xlu0 0
      %2782 = vperm.xlu0 %2781, %v2774
      %v2783 = vpop.permute.xlu0 %2782
      %v2785 = vmul.f32 %v2727, %v2778
      %v2786 = vmul.f32 %v2741, %v2778
      %v2787 = vmul.f32 %v2755, %v2778
      %v2788 = vmul.f32 %v2769, %v2778
      %v2789 = vmul.f32 %v2729, %v2783
      %v2790 = vmul.f32 %v2743, %v2783
      %v2791 = vmul.f32 %v2757, %v2783
      %v2792 = vmul.f32 %v2771, %v2783
      %v2793 = vld [vmem:[%s5 + $0x150] sm:$0xff]
      %v2794 = vld [vmem:[%s5 + $0x158] sm:$0xff]
      %2796 = vset.pattern.permute.xlu0 0
      %2797 = vperm.xlu0 %2796, %v2793
      %v2798 = vpop.permute.xlu0 %2797
      %2801 = vset.pattern.permute.xlu0 0
      %2802 = vperm.xlu0 %2801, %v2794
      %v2803 = vpop.permute.xlu0 %2802
      %v2805 = vadd.f32 %v2785, %v2798
      %v2806 = vadd.f32 %v2786, %v2798
      %v2807 = vadd.f32 %v2787, %v2798
      %v2808 = vadd.f32 %v2788, %v2798
      %v2809 = vadd.f32 %v2789, %v2803
      %v2810 = vadd.f32 %v2790, %v2803
      %v2811 = vadd.f32 %v2791, %v2803
      %v2812 = vadd.f32 %v2792, %v2803
      %v2813 = vmax.f32 %v2805, 0.0
      %v2814 = vmax.f32 %v2806, 0.0
      %v2815 = vmax.f32 %v2807, 0.0
      %v2816 = vmax.f32 %v2808, 0.0
      %v2817 = vmax.f32 %v2809, 0.0
      %v2818 = vmax.f32 %v2810, 0.0
      %v2819 = vmax.f32 %v2811, 0.0
      %v2820 = vmax.f32 %v2812, 0.0
      %2821 = vst [vmem:[%s251] sm:$0xff] %v2813
      %2822 = vst [vmem:[%s251 + $0x8] sm:$0xff] %v2814
      %2823 = vst [vmem:[%s251 + $0x10] sm:$0xff] %v2815
      %vm2824 = vcmask 293888
      %2825 = vst.msk [vmem:[%s251 + $0x18] sm:$0xff] %vm2824, %v2816
      %2826 = vst [vmem:[%s251 + $0x20] sm:$0xff] %v2817
      %2827 = vst [vmem:[%s251 + $0x28] sm:$0xff] %v2818
      %2828 = vst [vmem:[%s251 + $0x30] sm:$0xff] %v2819
      %2829 = vst.msk [vmem:[%s251 + $0x38] sm:$0xff] %vm2824, %v2820
      %p2830 = scmp.lt.s32.totalorder %s17, 1
      %s2831 = scalar_select %p2830, %s17, 1
      %s2832 = smul.addr %s2831, 8
      %s2833 = smul.addr %s2832, 8
      %s2834 = scalar_lea.vmem %s6, %s2833
      // Predicated region
      $region45: #{_forward_impl.1} parent=43 // pred_check
        %p2835 = pneg %p166
      $region46: #{_forward_impl.1} parent=43 // pred_check_branch
        %2837 = sbr.rel (%p2835) target = $region48
      $region47: #{_forward_impl.1} parent=43 // pred_region
        _
      $region48: #{_forward_impl.1} parent=43 // pred_fallthru
        _
    $region44: #{_forward_impl.1} parent=5 // pred_fallthru
      _
    %p2838 = scmp.le.s32.totalorder 2, %s12
    // Predicated region
    $region49: #{_forward_impl.1} parent=5 // pred_check
      %p2839 = pneg %p2838
    $region50: #{_forward_impl.1} parent=5 // pred_check_branch
      %2841 = sbr.rel (%p2839) target = $region52
    $region51: #{_forward_impl.1} parent=5 // pred_region
      %s2842 = ssub.s32 %s12, 2
      // Predicated region
      $region53: #{_forward_impl.1} parent=51 // pred_check
        %p2843 = pneg %p172
      $region54: #{_forward_impl.1} parent=51 // pred_check_branch
        %2845 = sbr.rel (%p2843) target = $region56
      $region55: #{_forward_impl.1} parent=51 // pred_region
        %p2846 = scmp.lt.s32.totalorder %s18, 1
        %s2847 = scalar_select %p2846, %s18, 1
        %s2848 = smul.addr %s2847, 8
        %s2849 = smul.addr %s2848, 8
        %s2850 = scalar_lea.vmem %s6, %s2849
      $region56: #{_forward_impl.1} parent=51 // pred_fallthru
        _
    $region52: #{_forward_impl.1} parent=5 // pred_fallthru
      _
  $region6: #{_forward_impl.1} parent=0 // loop_footer
    %s16 = sadd.s32 1, %s12
  $region7: #{_forward_impl.1} parent=0 // loop_footer_branch
    %11 = sbr.rel target = $region3
  $region8: #{_forward_impl.1} parent=0 // loop_exit
    _

</llo_original>
